<compile_context>
chip_gen: v7x
topology: tpu7x:2x2x1
jax: 0.10.0
libtpu: 0.0.40
codegen_flags: <defaults>
</compile_context>

<pallas_src>
import functools

import jax
import jax.numpy as jnp
from jax.experimental import pallas as pl
from jax.experimental.pallas import tpu as pltpu


def _cdiv(a, b):
    return -(-a // b)


# ----------------------------- Pallas kernel --------------------------------


def _fused_block23_kernel(p_ref, w2_ref, b2_ref, g2_ref, f2_ref,
                          w3_ref, b3_ref, g3_ref, f3_ref, o_ref,
                          *, spt, hw):
    # p_ref:  (spt*hw, K2) bf16   im2col patches of the block-1 activations
    # w2_ref: (K2, c2)    bf16    b2_ref: (1, c2) f32
    # g2/f2:  (spt, 1, c2) f32    pre-computed FiLM gamma/beta for block 2
    # w3_ref: (c2, c3)    bf16    b3_ref: (1, c3) f32
    # g3/f3:  (spt, 1, c3) f32    pre-computed FiLM gamma/beta for the final layer
    # o_ref:  (spt, hw, c3) bf16  lane-dense token output (c3 = 512)

    # ---- block 2: conv-as-matmul (bf16 in, f32 acc) + bias + SiLU + FiLM ----
    y = jnp.dot(p_ref[...], w2_ref[...], preferred_element_type=jnp.float32)
    y = y + b2_ref[...]
    y = y * (1.0 / (1.0 + jnp.exp(-y)))                 # SiLU in f32 (exp on EUP)
    c2 = y.shape[-1]
    # reshape only splits the major dim (free); FiLM broadcasts over the hw rows.
    y = y.reshape(spt, hw, c2)
    y = y * (1.0 + g2_ref[...]) + f2_ref[...]

    # ---- block 3: 1x1 projection + bias + final FiLM (no activation) ----
    y = y.reshape(spt * hw, c2).astype(w3_ref.dtype)    # bf16 LHS for the MXU
    z = jnp.dot(y, w3_ref[...], preferred_element_type=jnp.float32)
    z = z + b3_ref[...]
    c3 = z.shape[-1]
    z = z.reshape(spt, hw, c3)
    z = z * (1.0 + g3_ref[...]) + f3_ref[...]
    o_ref[...] = z.astype(o_ref.dtype)                  # bf16 tokens to HBM


# ----------------------------- tile planning ---------------------------------


def _has_multiple_tensorcores():
    """True on chips whose grid is sharded over >1 TensorCore (v4/v5p megacore, v7x)."""
    try:
        kind = jax.devices()[0].device_kind.lower()
    except Exception:
        return False
    single_tc = ("v5e" in kind) or ("v5 lite" in kind) or ("v5lite" in kind) or ("v6" in kind)
    return not single_tc


def _plan_tiles(n, hw, *, rows_cap=2048, multi_tc=False):
    """Pick samples-per-grid-step (spt) and the padded sample count n_pad.

    rows_cap bounds the matmul M dimension per grid step (spt*hw); big tiles
    amortise the ~0.35us fixed per-step overhead of the pipelined grid.
    """
    spt_max = max(1, rows_cap // hw)
    if multi_tc:
        steps = max(2, _cdiv(n, spt_max))
        steps += steps % 2            # even step count keeps both TensorCores busy
    else:
        steps = _cdiv(n, spt_max)     # single TC: just minimise the step count
    spt = _cdiv(n, steps)
    while (spt * hw) % 8 != 0:        # sublane divisibility of the block M dim
        spt += 1
    return spt, spt * steps


# --------------------------- fused pallas_call --------------------------------


def fused_block23(patches, w2, b2, g2, f2, w3, b3, g3, f3, *, n, hw, spt):
    """patches: (n*hw, K2) bf16; returns (n, hw, c3) bf16 tokens."""
    k2 = patches.shape[-1]
    c2 = w2.shape[1]
    c3 = w3.shape[1]
    steps = n // spt
    m = spt * hw
    m_total = n * hw

    # Scoped-VMEM budget: double-buffered patch/output blocks + resident weights +
    # f32 intermediates.  Raise above v5e's 16 MiB default, stay well below v7x's
    # 64 MiB physical VMEM.
    est = (2 * m * k2 * 2              # patch blocks (bf16, double buffered)
           + 2 * m * c3 * 2            # output blocks (bf16, double buffered)
           + 2 * (k2 * c2 + c2 * c3) * 2
           + 8 * spt * (c2 + c3) * 4
           + m * (c2 + c3) * 4)        # f32 intermediates y, z
    vmem_limit = min(max(int(est * 1.5) + (4 << 20), 32 << 20), 48 << 20)

    cost = pl.CostEstimate(
        flops=2 * m_total * (k2 * c2 + c2 * c3),
        transcendentals=m_total * c2,                   # exp in SiLU
        bytes_accessed=(m_total * k2 * 2 + m_total * c3 * 2
                        + (k2 * c2 + c2 * c3) * 2
                        + 2 * n * (c2 + c3) * 4
                        + 2 * (c2 + c3) * 4))

    kernel = functools.partial(_fused_block23_kernel, spt=spt, hw=hw)
    return pl.pallas_call(
        kernel,
        out_shape=jax.ShapeDtypeStruct((n, hw, c3), jnp.bfloat16),
        grid=(steps,),
        in_specs=[
            pl.BlockSpec((spt * hw, k2), lambda i: (i, 0)),    # patches (streamed)
            # constant index_map -> Pallas keeps these resident (no per-step re-DMA)
            pl.BlockSpec((k2, c2), lambda i: (0, 0)),          # w2 (bf16)
            pl.BlockSpec((1, c2), lambda i: (0, 0)),           # b2
            pl.BlockSpec((spt, 1, c2), lambda i: (i, 0, 0)),   # gamma2 (per sample)
            pl.BlockSpec((spt, 1, c2), lambda i: (i, 0, 0)),   # beta2
            pl.BlockSpec((c2, c3), lambda i: (0, 0)),          # w3 (bf16)
            pl.BlockSpec((1, c3), lambda i: (0, 0)),           # b3
            pl.BlockSpec((spt, 1, c3), lambda i: (i, 0, 0)),   # gamma3
            pl.BlockSpec((spt, 1, c3), lambda i: (i, 0, 0)),   # beta3
        ],
        out_specs=pl.BlockSpec((spt, hw, c3), lambda i: (i, 0, 0)),
        compiler_params=pltpu.CompilerParams(
            dimension_semantics=("parallel",),
            vmem_limit_bytes=vmem_limit),
        cost_estimate=cost,
    )(patches, w2, b2, g2, f2, w3, b3, g3, f3)


# ------------------------------- XLA glue ------------------------------------


def _stem_conv_silu_film(x_nhwc, w_hwio, b, gamma, beta):
    """Block 1: 3x3/s2 conv (3 -> c1) + SiLU + FiLM, all in XLA (negligible FLOPs,
    K=27 maps poorly to MXU lanes so a Pallas matmul buys nothing here)."""
    y = jax.lax.conv_general_dilated(
        x_nhwc, w_hwio, window_strides=(2, 2), padding=((1, 1), (1, 1)),
        dimension_numbers=("NHWC", "HWIO", "NHWC"))
    y = y + b.reshape(1, 1, 1, -1)
    y = y * jax.nn.sigmoid(y)
    y = y * (1.0 + gamma[:, None, None, :]) + beta[:, None, None, :]
    return y


def _im2col_3x3_s2(x):
    """x: (N, H, W, C) -> patches (N, Ho*Wo, 9*C), Ho, Wo  (3x3, stride 2, pad 1)."""
    patches = jax.lax.conv_general_dilated_patches(
        x, filter_shape=(3, 3), window_strides=(2, 2),
        padding=((1, 1), (1, 1)),
        dimension_numbers=("NHWC", "HWIO", "NHWC"))
    n, ho, wo, kkc = patches.shape
    return patches.reshape(n, ho * wo, kkc), ho, wo


# ------------------------------ tokenizer module ------------------------------


class RT1ImageTokenizerPallas:
    """Pallas/TPU re-implementation of RT1ImageTokenizer (use_token_learner=False).

    The EfficientNet-B3 backbone inside `EfficientNetEncoder` (whose definition is
    not part of the given module) is replaced by a reduced early-FiLM conv stack with
    the same I/O structure: a strided stem conv, a strided conv block and a 1x1
    projection to `embedding_output_dim`, each FiLM-conditioned on the context, with
    pooling=False so a spatial token grid is returned.
    """

    def __init__(self, embedding_output_dim=512, use_token_learner=False,
                 num_tokens=8, context_dim=512, key=None):
        # TODO(synk): TokenLearnerModule path (use_token_learner=True) not implemented;
        # the default module configuration uses use_token_learner=False.
        assert not use_token_learner
        self.embedding_output_dim = embedding_output_dim
        self.context_dim = context_dim
        c1, c2, c3 = 32, 64, embedding_output_dim
        self.c1, self.c2, self.c3 = c1, c2, c3

        keys = jax.random.split(key, 9)

        def dense(k, fi, fo):
            return (jax.random.normal(k, (fi, fo), jnp.float32)
                    / jnp.sqrt(jnp.float32(fi)))

        zeros = lambda cc: jnp.zeros((1, cc), jnp.float32)

        # block 1 (stem): 3x3/s2 conv 3 -> c1 (XLA conv), HWIO layout.
        self.w1 = dense(keys[0], 3 * 3 * 3, c1).reshape(3, 3, 3, c1)
        self.b1 = jnp.zeros((c1,), jnp.float32)
        # block 2: 3x3/s2 conv c1 -> c2, flattened-tap weight for the im2col matmul.
        self.w2 = dense(keys[1], 3 * 3 * c1, c2)
        self.b2 = zeros(c2)
        # block 3: 1x1 projection c2 -> embedding_output_dim.
        self.w3 = dense(keys[2], c2, c3)
        self.b3 = zeros(c3)
        # bf16 copies for the MXU (accumulation stays f32 inside the kernel).
        self.w2_bf16 = self.w2.astype(jnp.bfloat16)
        self.w3_bf16 = self.w3.astype(jnp.bfloat16)

        # FiLM projections for all three layers, stacked so gamma/beta for every
        # layer come out of ONE (n, D) @ (D, 2*(c1+c2+c3)) matmul in XLA.
        wg1, wb1 = dense(keys[3], context_dim, c1), dense(keys[4], context_dim, c1)
        wg2, wb2 = dense(keys[5], context_dim, c2), dense(keys[6], context_dim, c2)
        wg3, wb3 = dense(keys[7], context_dim, c3), dense(keys[8], context_dim, c3)
        self.film_w = jnp.concatenate([wg1, wb1, wg2, wb2, wg3, wb3], axis=1)
        self.film_b = jnp.zeros((1, 2 * (c1 + c2 + c3)), jnp.float32)
        self._film_splits = [c1, 2 * c1, 2 * c1 + c2,
                             2 * c1 + 2 * c2, 2 * c1 + 2 * c2 + c3]

    def _film_params(self, context):
        gb = context @ self.film_w + self.film_b            # (n, 2*(c1+c2+c3))
        return jnp.split(gb, self._film_splits, axis=1)     # g1,f1,g2,f2,g3,f3

    def __call__(self, image, context=None):
        b, t, c, h, w = image.shape
        n = b * t
        image = image.reshape(n, c, h, w)
        if context is not None:
            context = context.reshape(n, -1).astype(jnp.float32)
        else:
            context = jnp.zeros((n, self.context_dim), jnp.float32)

        # FiLM gamma/beta for every layer, hoisted out of the Pallas kernel.
        g1, f1, g2, f2, g3, f3 = self._film_params(context)

        x = jnp.transpose(image, (0, 2, 3, 1))              # NCHW -> NHWC (glue)

        # block 1 (stem) in XLA: conv + SiLU + FiLM; result cast to bf16 so the
        # im2col materialisation only moves half the bytes.
        x = _stem_conv_silu_film(x, self.w1, self.b1, g1, f1).astype(jnp.bfloat16)

        # im2col for block 2 (XLA), then ONE fused Pallas kernel doing
        # (patches @ w2 + b2) -> SiLU -> FiLM -> (@ w3 + b3) -> FiLM.
        # TODO(synk): fold the 3x3/s2 gather into the kernel (read the bf16 activation
        # directly and accumulate 9 per-tap matmuls in VMEM) to remove the patch
        # round-trip through HBM entirely.
        patches, ho, wo = _im2col_3x3_s2(x)                  # (n, hw, 9*c1) bf16
        hw = ho * wo
        k2 = patches.shape[-1]

        spt, n_pad = _plan_tiles(n, hw, rows_cap=2048,
                                 multi_tc=_has_multiple_tensorcores())
        if n_pad > n:
            pad = n_pad - n
            patches = jnp.pad(patches, ((0, pad), (0, 0), (0, 0)))
            g2 = jnp.pad(g2, ((0, pad), (0, 0)))
            f2 = jnp.pad(f2, ((0, pad), (0, 0)))
            g3 = jnp.pad(g3, ((0, pad), (0, 0)))
            f3 = jnp.pad(f3, ((0, pad), (0, 0)))

        patches = patches.reshape(n_pad * hw, k2)
        tokens = fused_block23(
            patches, self.w2_bf16, self.b2,
            g2.reshape(n_pad, 1, self.c2), f2.reshape(n_pad, 1, self.c2),
            self.w3_bf16, self.b3,
            g3.reshape(n_pad, 1, self.c3), f3.reshape(n_pad, 1, self.c3),
            n=n_pad, hw=hw, spt=spt)
        tokens = tokens[:n]

        # tokens: (n, hw, embed) == PyTorch's tokens.view(b, t, 512, -1).transpose(2, 3)
        # applied to the NCHW feature map.
        return tokens.reshape(b, t, hw, self.c3)


# ---------------------------------- main -------------------------------------

if __name__ == "__main__":
    key = jax.random.PRNGKey(0)
    k_img, k_ctx, k_params = jax.random.split(key, 3)

    b, t, c, h, w = 2, 2, 3, 32, 32
    ctx_dim = 512
    image = jax.random.normal(k_img, (b, t, c, h, w), dtype=jnp.float32)
    context = jax.random.normal(k_ctx, (b, t, ctx_dim), dtype=jnp.float32)

    tokenizer = RT1ImageTokenizerPallas(embedding_output_dim=512,
                                        use_token_learner=False,
                                        context_dim=ctx_dim,
                                        key=k_params)

    forward = jax.jit(lambda img, ctx: tokenizer(img, ctx))
    tokens = forward(image, context)
    tokens = jax.block_until_ready(tokens)

    # 32x32 input, two stride-2 stages -> 8x8 = 64 spatial tokens of dim 512.
    assert tokens.shape == (b, t, 8 * 8, 512), tokens.shape
    assert tokens.dtype == jnp.bfloat16, tokens.dtype
    assert bool(jnp.all(jnp.isfinite(tokens.astype(jnp.float32))))
    print("KERNEL_OK")
</pallas_src>

<mosaic_0001>
module attributes {stable_mosaic.version = 11 : i64} {
  func.func @_fused_block23_kernel(%arg0: i32, %arg1: memref<128x288xbf16, #tpu.memory_space<vmem>>, %arg2: memref<288x64xbf16, #tpu.memory_space<vmem>>, %arg3: memref<1x64xf32, #tpu.memory_space<vmem>>, %arg4: memref<2x1x64xf32, #tpu.memory_space<vmem>>, %arg5: memref<2x1x64xf32, #tpu.memory_space<vmem>>, %arg6: memref<64x512xbf16, #tpu.memory_space<vmem>>, %arg7: memref<1x512xf32, #tpu.memory_space<vmem>>, %arg8: memref<2x1x512xf32, #tpu.memory_space<vmem>>, %arg9: memref<2x1x512xf32, #tpu.memory_space<vmem>>, %arg10: memref<2x64x512xbf16, #tpu.memory_space<vmem>>) attributes {dimension_semantics = [#tpu.dimension_semantics<parallel>], iteration_bounds = array<i64: 2>, scalar_prefetch = 0 : i64, scratch_operands = 0 : i64, tpu.core_type = #tpu.core_type<tc>, window_params = [{transform_indices = @transform_0, window_bounds = array<i64: 128, 288>}, {pipeline_mode = #tpu.pipeline_mode<synchronous>, transform_indices = @transform_1, window_bounds = array<i64: 288, 64>}, {pipeline_mode = #tpu.pipeline_mode<synchronous>, transform_indices = @transform_2, window_bounds = array<i64: 1, 64>}, {transform_indices = @transform_3, window_bounds = array<i64: 2, 1, 64>}, {transform_indices = @transform_4, window_bounds = array<i64: 2, 1, 64>}, {pipeline_mode = #tpu.pipeline_mode<synchronous>, transform_indices = @transform_5, window_bounds = array<i64: 64, 512>}, {pipeline_mode = #tpu.pipeline_mode<synchronous>, transform_indices = @transform_6, window_bounds = array<i64: 1, 512>}, {transform_indices = @transform_7, window_bounds = array<i64: 2, 1, 512>}, {transform_indices = @transform_8, window_bounds = array<i64: 2, 1, 512>}, {transform_indices = @transform_9, window_bounds = array<i64: 2, 64, 512>}]} {
    %c0 = arith.constant 0 : index
    %c0_0 = arith.constant 0 : index
    %0 = vector.load %arg1[%c0, %c0_0] : memref<128x288xbf16, #tpu.memory_space<vmem>>, vector<128x288xbf16>
    %c0_1 = arith.constant 0 : index
    %c0_2 = arith.constant 0 : index
    %1 = vector.load %arg2[%c0_1, %c0_2] : memref<288x64xbf16, #tpu.memory_space<vmem>>, vector<288x64xbf16>
    %cst = arith.constant dense<0.000000e+00> : vector<128x64xf32>
    %2 = tpu.matmul %0, %1, %cst {dimension_numbers = #tpu.dot_dimension_numbers<[1], [0], [0], [1], [0, 0, 1, 1], [], []>} : vector<128x288xbf16>, vector<288x64xbf16>, vector<128x64xf32> -> vector<128x64xf32>
    %c0_3 = arith.constant 0 : index
    %c0_4 = arith.constant 0 : index
    %3 = vector.load %arg3[%c0_3, %c0_4] : memref<1x64xf32, #tpu.memory_space<vmem>>, vector<1x64xf32>
    %4 = vector.broadcast %3 : vector<1x64xf32> to vector<128x64xf32>
    %5 = arith.addf %2, %4 : vector<128x64xf32>
    %cst_5 = arith.constant 0.000000e+00 : f32
    %6 = vector.broadcast %cst_5 : f32 to vector<128x64xf32>
    %7 = arith.subf %6, %5 : vector<128x64xf32>
    %8 = math.exp %7 : vector<128x64xf32>
    %cst_6 = arith.constant 1.000000e+00 : f32
    %9 = vector.broadcast %cst_6 : f32 to vector<128x64xf32>
    %10 = arith.addf %9, %8 : vector<128x64xf32>
    %cst_7 = arith.constant 1.000000e+00 : f32
    %11 = vector.broadcast %cst_7 : f32 to vector<128x64xf32>
    %12 = arith.divf %11, %10 : vector<128x64xf32>
    %13 = arith.mulf %5, %12 : vector<128x64xf32>
    %14 = vector.shape_cast %13 : vector<128x64xf32> to vector<2x64x64xf32>
    %c0_8 = arith.constant 0 : index
    %c0_9 = arith.constant 0 : index
    %c0_10 = arith.constant 0 : index
    %15 = vector.load %arg4[%c0_8, %c0_9, %c0_10] : memref<2x1x64xf32, #tpu.memory_space<vmem>>, vector<2x1x64xf32>
    %cst_11 = arith.constant 1.000000e+00 : f32
    %16 = vector.broadcast %cst_11 : f32 to vector<2x1x64xf32>
    %17 = arith.addf %16, %15 : vector<2x1x64xf32>
    %18 = vector.broadcast %17 : vector<2x1x64xf32> to vector<2x64x64xf32>
    %19 = arith.mulf %14, %18 : vector<2x64x64xf32>
    %c0_12 = arith.constant 0 : index
    %c0_13 = arith.constant 0 : index
    %c0_14 = arith.constant 0 : index
    %20 = vector.load %arg5[%c0_12, %c0_13, %c0_14] : memref<2x1x64xf32, #tpu.memory_space<vmem>>, vector<2x1x64xf32>
    %21 = vector.broadcast %20 : vector<2x1x64xf32> to vector<2x64x64xf32>
    %22 = arith.addf %19, %21 : vector<2x64x64xf32>
    %23 = vector.shape_cast %22 : vector<2x64x64xf32> to vector<128x64xf32>
    %24 = arith.truncf %23 : vector<128x64xf32> to vector<128x64xbf16>
    %c0_15 = arith.constant 0 : index
    %c0_16 = arith.constant 0 : index
    %25 = vector.load %arg6[%c0_15, %c0_16] : memref<64x512xbf16, #tpu.memory_space<vmem>>, vector<64x512xbf16>
    %cst_17 = arith.constant dense<0.000000e+00> : vector<128x512xf32>
    %26 = tpu.matmul %24, %25, %cst_17 {dimension_numbers = #tpu.dot_dimension_numbers<[1], [0], [0], [1], [0, 0, 1, 1], [], []>} : vector<128x64xbf16>, vector<64x512xbf16>, vector<128x512xf32> -> vector<128x512xf32>
    %c0_18 = arith.constant 0 : index
    %c0_19 = arith.constant 0 : index
    %27 = vector.load %arg7[%c0_18, %c0_19] : memref<1x512xf32, #tpu.memory_space<vmem>>, vector<1x512xf32>
    %28 = vector.broadcast %27 : vector<1x512xf32> to vector<128x512xf32>
    %29 = arith.addf %26, %28 : vector<128x512xf32>
    %30 = vector.shape_cast %29 : vector<128x512xf32> to vector<2x64x512xf32>
    %c0_20 = arith.constant 0 : index
    %c0_21 = arith.constant 0 : index
    %c0_22 = arith.constant 0 : index
    %31 = vector.load %arg8[%c0_20, %c0_21, %c0_22] : memref<2x1x512xf32, #tpu.memory_space<vmem>>, vector<2x1x512xf32>
    %cst_23 = arith.constant 1.000000e+00 : f32
    %32 = vector.broadcast %cst_23 : f32 to vector<2x1x512xf32>
    %33 = arith.addf %32, %31 : vector<2x1x512xf32>
    %34 = vector.broadcast %33 : vector<2x1x512xf32> to vector<2x64x512xf32>
    %35 = arith.mulf %30, %34 : vector<2x64x512xf32>
    %c0_24 = arith.constant 0 : index
    %c0_25 = arith.constant 0 : index
    %c0_26 = arith.constant 0 : index
    %36 = vector.load %arg9[%c0_24, %c0_25, %c0_26] : memref<2x1x512xf32, #tpu.memory_space<vmem>>, vector<2x1x512xf32>
    %37 = vector.broadcast %36 : vector<2x1x512xf32> to vector<2x64x512xf32>
    %38 = arith.addf %35, %37 : vector<2x64x512xf32>
    %39 = arith.truncf %38 : vector<2x64x512xf32> to vector<2x64x512xbf16>
    %c0_27 = arith.constant 0 : index
    %c0_28 = arith.constant 0 : index
    %c0_29 = arith.constant 0 : index
    %40 = vector.load %arg10[%c0_27, %c0_28, %c0_29] : memref<2x64x512xbf16, #tpu.memory_space<vmem>>, vector<2x64x512xbf16>
    tpu.vector_store %arg10[%c0_27, %c0_28, %c0_29], %39 {strides = array<i32>} : memref<2x64x512xbf16, #tpu.memory_space<vmem>>, vector<2x64x512xbf16>,
    return
  }
  func.func @transform_0(%arg0: i32) -> (i32, i32) {
    %c0_i32 = arith.constant 0 : i32
    %c0_i32_0 = arith.constant 0 : i32
    return %arg0, %c0_i32 : i32, i32
  }
  func.func @transform_1(%arg0: i32) -> (i32, i32) {
    %c0_i32 = arith.constant 0 : i32
    %c0_i32_0 = arith.constant 0 : i32
    %c0_i32_1 = arith.constant 0 : i32
    return %c0_i32, %c0_i32_0 : i32, i32
  }
  func.func @transform_2(%arg0: i32) -> (i32, i32) {
    %c0_i32 = arith.constant 0 : i32
    %c0_i32_0 = arith.constant 0 : i32
    %c0_i32_1 = arith.constant 0 : i32
    return %c0_i32, %c0_i32_0 : i32, i32
  }
  func.func @transform_3(%arg0: i32) -> (i32, i32, i32) {
    %c0_i32 = arith.constant 0 : i32
    %c0_i32_0 = arith.constant 0 : i32
    %c0_i32_1 = arith.constant 0 : i32
    return %arg0, %c0_i32, %c0_i32_0 : i32, i32, i32
  }
  func.func @transform_4(%arg0: i32) -> (i32, i32, i32) {
    %c0_i32 = arith.constant 0 : i32
    %c0_i32_0 = arith.constant 0 : i32
    %c0_i32_1 = arith.constant 0 : i32
    return %arg0, %c0_i32, %c0_i32_0 : i32, i32, i32
  }
  func.func @transform_5(%arg0: i32) -> (i32, i32) {
    %c0_i32 = arith.constant 0 : i32
    %c0_i32_0 = arith.constant 0 : i32
    %c0_i32_1 = arith.constant 0 : i32
    return %c0_i32, %c0_i32_0 : i32, i32
  }
  func.func @transform_6(%arg0: i32) -> (i32, i32) {
    %c0_i32 = arith.constant 0 : i32
    %c0_i32_0 = arith.constant 0 : i32
    %c0_i32_1 = arith.constant 0 : i32
    return %c0_i32, %c0_i32_0 : i32, i32
  }
  func.func @transform_7(%arg0: i32) -> (i32, i32, i32) {
    %c0_i32 = arith.constant 0 : i32
    %c0_i32_0 = arith.constant 0 : i32
    %c0_i32_1 = arith.constant 0 : i32
    return %arg0, %c0_i32, %c0_i32_0 : i32, i32, i32
  }
  func.func @transform_8(%arg0: i32) -> (i32, i32, i32) {
    %c0_i32 = arith.constant 0 : i32
    %c0_i32_0 = arith.constant 0 : i32
    %c0_i32_1 = arith.constant 0 : i32
    return %arg0, %c0_i32, %c0_i32_0 : i32, i32, i32
  }
  func.func @transform_9(%arg0: i32) -> (i32, i32, i32) {
    %c0_i32 = arith.constant 0 : i32
    %c0_i32_0 = arith.constant 0 : i32
    %c0_i32_1 = arith.constant 0 : i32
    return %arg0, %c0_i32, %c0_i32_0 : i32, i32, i32
  }
}

</mosaic_0001>

<llo_original>
// kernel: _lambda_.1
$region0: #{_lambda_.1}
  #allocation0 [shape = 'u32[]', space=smem, size = 0x4, offset = 0x4, fixed_abs, tag = 'smem constant byte address 0x4 - core index']
  #allocation1 [shape = 'u32[144,128]{1,0:T(1,128)}', space=vmem, size = 0x12000, scoped, tag = 'internal scratch']
  %s0 = inlined_call_operand.vmem [shape: bf16[256,288], index: 0, kind: input, shape index: {}]
  %s1 = inlined_call_operand.vmem [shape: bf16[288,64], index: 1, kind: input, shape index: {}]
  %s2 = inlined_call_operand.vmem [shape: f32[1,64], index: 2, kind: input, shape index: {}]
  %s3 = inlined_call_operand.vmem [shape: f32[4,1,64], index: 3, kind: input, shape index: {}]
  %s4 = inlined_call_operand.vmem [shape: f32[4,1,64], index: 4, kind: input, shape index: {}]
  %s5 = inlined_call_operand.vmem [shape: bf16[64,512], index: 5, kind: input, shape index: {}]
  %s6 = inlined_call_operand.vmem [shape: f32[1,512], index: 6, kind: input, shape index: {}]
  %s7 = inlined_call_operand.vmem [shape: f32[4,1,512], index: 7, kind: input, shape index: {}]
  %s8 = inlined_call_operand.vmem [shape: f32[4,1,512], index: 8, kind: input, shape index: {}]
  %s9 = inlined_call_operand.hbm [shape: bf16[4,64,512], index: 9, kind: output, shape index: {}]
  %s10 = sld [smem:[#allocation0]]
  $region69: #{_lambda_.1} parent=0
    _
  %s12 = ssub.s32 1, %s10
  %s13 = scalar_select 0, %s12, %s10
  $region1: #{_lambda_.1} parent=0
    #allocation2 [shape = 'u8[262144]{0}', space=vmem, size = 0x40000, scoped, tag = 'output window, operand 0']
    #allocation3 [shape = 's32[2]{0}', space=sflag, size = 0x8, scoped, tag = 'scoped memory for _lambda_.1']
    %14 = vsyncpa [#allocation3], 0
    %s15 = scalar_lea.sflag [#allocation3], 1
    %16 = vsyncpa %s15, 0
    loop: start=0, step=1, limit=4
    $region2: #{_lambda_.1} parent=1 // loop_pre_header
      _
    $region3: #{_lambda_.1} parent=1 // loop_header
      %s18 = sphi 0, %s22
      %p19 = scmp.ge.s32.totalorder %s18, 4
      %s28 = sphi 0, %s30
      %s31 = sphi 0, %s28
      %s32 = sphi 0, %s31
      %s48 = sphi 0, %s32
      %s52 = sphi 0, %s52
      %s54 = sphi 0, %s52
      %s55 = sphi 0, %s54
      %s69 = sphi 0, %s55
      %s73 = sphi 0, %s73
      %s75 = sphi 0, %s73
      %s76 = sphi 0, %s75
      %s90 = sphi 0, %s76
      %s96 = sphi 0, %s98
      %s99 = sphi 0, %s96
      %s100 = sphi 0, %s99
      %s116 = sphi 0, %s100
      %s122 = sphi 0, %s124
      %s125 = sphi 0, %s122
      %s126 = sphi 0, %s125
      %s142 = sphi 0, %s126
      %s146 = sphi 0, %s146
      %s148 = sphi 0, %s146
      %s149 = sphi 0, %s148
      %s163 = sphi 0, %s149
      %s167 = sphi 0, %s167
      %s169 = sphi 0, %s167
      %s170 = sphi 0, %s169
      %s184 = sphi 0, %s170
      %s190 = sphi 0, %s192
      %s193 = sphi 0, %s190
      %s194 = sphi 0, %s193
      %s210 = sphi 0, %s194
      %s216 = sphi 0, %s218
      %s219 = sphi 0, %s216
      %s220 = sphi 0, %s219
      %s236 = sphi 0, %s220
      %s242 = sphi 0, %s244
      %s245 = sphi 0, %s242
      %s246 = sphi 0, %s245
      %s262 = sphi 0, %s246
    $region4: #{_lambda_.1} parent=1 // loop_header_branch
      %21 = sbr.rel (%p19) target = $region8
    $region5: #{_lambda_.1} parent=1 // loop_body
      %s23 = ssub.s32 %s18, 1
      %s24 = ssub.s32 %s18, 2
      %s25 = sadd.s32 %s18, 1
      %s26 = ssub.s32 %s18, %s25
      %p27 = scmp.eq.s32.totalorder %s26, 0
      %s29 = sadd.s32 %s28, 1
      %s30 = scalar_select %p27, %s28, %s29
      %p33 = pneg %p27
      %p34 = scmp.eq.s32.totalorder %s18, 1
      %p35 = por %p33, %p34
      %p36 = scmp.ne.s32.totalorder %s28, %s31
      %p37 = scmp.eq.s32.totalorder %s18, 0
      %p38 = por %p36, %p37
      %p39 = scmp.ne.s32.totalorder %s28, %s31
      %p40 = scmp.eq.s32.totalorder %s23, 1
      %p41 = por %p39, %p40
      %p42 = scmp.ne.s32.totalorder %s31, %s32
      %p43 = scmp.eq.s32.totalorder %s23, 0
      %p44 = por %p42, %p43
      %p45 = scmp.ne.s32.totalorder %s31, %s32
      %p46 = scmp.eq.s32.totalorder %s24, 1
      %p47 = por %p45, %p46
      %p49 = scmp.ne.s32.totalorder %s32, %s48
      %p50 = scmp.eq.s32.totalorder %s24, 0
      %p51 = por %p49, %p50
      %s53 = sadd.s32 %s52, 1
      %p56 = scmp.eq.s32.totalorder %s18, 1
      %p57 = scmp.ne.s32.totalorder %s52, %s54
      %p58 = scmp.eq.s32.totalorder %s18, 0
      %p59 = por %p57, %p58
      %p60 = scmp.ne.s32.totalorder %s52, %s54
      %p61 = scmp.eq.s32.totalorder %s23, 1
      %p62 = por %p60, %p61
      %p63 = scmp.ne.s32.totalorder %s54, %s55
      %p64 = scmp.eq.s32.totalorder %s23, 0
      %p65 = por %p63, %p64
      %p66 = scmp.ne.s32.totalorder %s54, %s55
      %p67 = scmp.eq.s32.totalorder %s24, 1
      %p68 = por %p66, %p67
      %p70 = scmp.ne.s32.totalorder %s55, %s69
      %p71 = scmp.eq.s32.totalorder %s24, 0
      %p72 = por %p70, %p71
      %s74 = sadd.s32 %s73, 1
      %p77 = scmp.eq.s32.totalorder %s18, 1
      %p78 = scmp.ne.s32.totalorder %s73, %s75
      %p79 = scmp.eq.s32.totalorder %s18, 0
      %p80 = por %p78, %p79
      %p81 = scmp.ne.s32.totalorder %s73, %s75
      %p82 = scmp.eq.s32.totalorder %s23, 1
      %p83 = por %p81, %p82
      %p84 = scmp.ne.s32.totalorder %s75, %s76
      %p85 = scmp.eq.s32.totalorder %s23, 0
      %p86 = por %p84, %p85
      %p87 = scmp.ne.s32.totalorder %s75, %s76
      %p88 = scmp.eq.s32.totalorder %s24, 1
      %p89 = por %p87, %p88
      %p91 = scmp.ne.s32.totalorder %s76, %s90
      %p92 = scmp.eq.s32.totalorder %s24, 0
      %p93 = por %p91, %p92
      %s94 = ssub.s32 %s18, %s25
      %p95 = scmp.eq.s32.totalorder %s94, 0
      %s97 = sadd.s32 %s96, 1
      %s98 = scalar_select %p95, %s96, %s97
      %p101 = pneg %p95
      %p102 = scmp.eq.s32.totalorder %s18, 1
      %p103 = por %p101, %p102
      %p104 = scmp.ne.s32.totalorder %s96, %s99
      %p105 = scmp.eq.s32.totalorder %s18, 0
      %p106 = por %p104, %p105
      %p107 = scmp.ne.s32.totalorder %s96, %s99
      %p108 = scmp.eq.s32.totalorder %s23, 1
      %p109 = por %p107, %p108
      %p110 = scmp.ne.s32.totalorder %s99, %s100
      %p111 = scmp.eq.s32.totalorder %s23, 0
      %p112 = por %p110, %p111
      %p113 = scmp.ne.s32.totalorder %s99, %s100
      %p114 = scmp.eq.s32.totalorder %s24, 1
      %p115 = por %p113, %p114
      %p117 = scmp.ne.s32.totalorder %s100, %s116
      %p118 = scmp.eq.s32.totalorder %s24, 0
      %p119 = por %p117, %p118
      %s120 = ssub.s32 %s18, %s25
      %p121 = scmp.eq.s32.totalorder %s120, 0
      %s123 = sadd.s32 %s122, 1
      %s124 = scalar_select %p121, %s122, %s123
      %p127 = pneg %p121
      %p128 = scmp.eq.s32.totalorder %s18, 1
      %p129 = por %p127, %p128
      %p130 = scmp.ne.s32.totalorder %s122, %s125
      %p131 = scmp.eq.s32.totalorder %s18, 0
      %p132 = por %p130, %p131
      %p133 = scmp.ne.s32.totalorder %s122, %s125
      %p134 = scmp.eq.s32.totalorder %s23, 1
      %p135 = por %p133, %p134
      %p136 = scmp.ne.s32.totalorder %s125, %s126
      %p137 = scmp.eq.s32.totalorder %s23, 0
      %p138 = por %p136, %p137
      %p139 = scmp.ne.s32.totalorder %s125, %s126
      %p140 = scmp.eq.s32.totalorder %s24, 1
      %p141 = por %p139, %p140
      %p143 = scmp.ne.s32.totalorder %s126, %s142
      %p144 = scmp.eq.s32.totalorder %s24, 0
      %p145 = por %p143, %p144
      %s147 = sadd.s32 %s146, 1
      %p150 = scmp.eq.s32.totalorder %s18, 1
      %p151 = scmp.ne.s32.totalorder %s146, %s148
      %p152 = scmp.eq.s32.totalorder %s18, 0
      %p153 = por %p151, %p152
      %p154 = scmp.ne.s32.totalorder %s146, %s148
      %p155 = scmp.eq.s32.totalorder %s23, 1
      %p156 = por %p154, %p155
      %p157 = scmp.ne.s32.totalorder %s148, %s149
      %p158 = scmp.eq.s32.totalorder %s23, 0
      %p159 = por %p157, %p158
      %p160 = scmp.ne.s32.totalorder %s148, %s149
      %p161 = scmp.eq.s32.totalorder %s24, 1
      %p162 = por %p160, %p161
      %p164 = scmp.ne.s32.totalorder %s149, %s163
      %p165 = scmp.eq.s32.totalorder %s24, 0
      %p166 = por %p164, %p165
      %s168 = sadd.s32 %s167, 1
      %p171 = scmp.eq.s32.totalorder %s18, 1
      %p172 = scmp.ne.s32.totalorder %s167, %s169
      %p173 = scmp.eq.s32.totalorder %s18, 0
      %p174 = por %p172, %p173
      %p175 = scmp.ne.s32.totalorder %s167, %s169
      %p176 = scmp.eq.s32.totalorder %s23, 1
      %p177 = por %p175, %p176
      %p178 = scmp.ne.s32.totalorder %s169, %s170
      %p179 = scmp.eq.s32.totalorder %s23, 0
      %p180 = por %p178, %p179
      %p181 = scmp.ne.s32.totalorder %s169, %s170
      %p182 = scmp.eq.s32.totalorder %s24, 1
      %p183 = por %p181, %p182
      %p185 = scmp.ne.s32.totalorder %s170, %s184
      %p186 = scmp.eq.s32.totalorder %s24, 0
      %p187 = por %p185, %p186
      %s188 = ssub.s32 %s18, %s25
      %p189 = scmp.eq.s32.totalorder %s188, 0
      %s191 = sadd.s32 %s190, 1
      %s192 = scalar_select %p189, %s190, %s191
      %p195 = pneg %p189
      %p196 = scmp.eq.s32.totalorder %s18, 1
      %p197 = por %p195, %p196
      %p198 = scmp.ne.s32.totalorder %s190, %s193
      %p199 = scmp.eq.s32.totalorder %s18, 0
      %p200 = por %p198, %p199
      %p201 = scmp.ne.s32.totalorder %s190, %s193
      %p202 = scmp.eq.s32.totalorder %s23, 1
      %p203 = por %p201, %p202
      %p204 = scmp.ne.s32.totalorder %s193, %s194
      %p205 = scmp.eq.s32.totalorder %s23, 0
      %p206 = por %p204, %p205
      %p207 = scmp.ne.s32.totalorder %s193, %s194
      %p208 = scmp.eq.s32.totalorder %s24, 1
      %p209 = por %p207, %p208
      %p211 = scmp.ne.s32.totalorder %s194, %s210
      %p212 = scmp.eq.s32.totalorder %s24, 0
      %p213 = por %p211, %p212
      %s214 = ssub.s32 %s18, %s25
      %p215 = scmp.eq.s32.totalorder %s214, 0
      %s217 = sadd.s32 %s216, 1
      %s218 = scalar_select %p215, %s216, %s217
      %p221 = pneg %p215
      %p222 = scmp.eq.s32.totalorder %s18, 1
      %p223 = por %p221, %p222
      %p224 = scmp.ne.s32.totalorder %s216, %s219
      %p225 = scmp.eq.s32.totalorder %s18, 0
      %p226 = por %p224, %p225
      %p227 = scmp.ne.s32.totalorder %s216, %s219
      %p228 = scmp.eq.s32.totalorder %s23, 1
      %p229 = por %p227, %p228
      %p230 = scmp.ne.s32.totalorder %s219, %s220
      %p231 = scmp.eq.s32.totalorder %s23, 0
      %p232 = por %p230, %p231
      %p233 = scmp.ne.s32.totalorder %s219, %s220
      %p234 = scmp.eq.s32.totalorder %s24, 1
      %p235 = por %p233, %p234
      %p237 = scmp.ne.s32.totalorder %s220, %s236
      %p238 = scmp.eq.s32.totalorder %s24, 0
      %p239 = por %p237, %p238
      %s240 = ssub.s32 %s18, %s25
      %p241 = scmp.eq.s32.totalorder %s240, 0
      %s243 = sadd.s32 %s242, 1
      %s244 = scalar_select %p241, %s242, %s243
      %p247 = pneg %p241
      %p248 = scmp.eq.s32.totalorder %s18, 1
      %p249 = por %p247, %p248
      %p250 = scmp.ne.s32.totalorder %s242, %s245
      %p251 = scmp.eq.s32.totalorder %s18, 0
      %p252 = por %p250, %p251
      %p253 = scmp.ne.s32.totalorder %s242, %s245
      %p254 = scmp.eq.s32.totalorder %s23, 1
      %p255 = por %p253, %p254
      %p256 = scmp.ne.s32.totalorder %s245, %s246
      %p257 = scmp.eq.s32.totalorder %s23, 0
      %p258 = por %p256, %p257
      %p259 = scmp.ne.s32.totalorder %s245, %s246
      %p260 = scmp.eq.s32.totalorder %s24, 1
      %p261 = por %p259, %p260
      %p263 = scmp.ne.s32.totalorder %s246, %s262
      %p264 = scmp.eq.s32.totalorder %s24, 0
      %p265 = por %p263, %p264
      %p266 = scmp.le.s32.totalorder 1, %s18
      %p267 = scmp.lt.s32.totalorder %s18, 3
      %p268 = pnand %p266, %p267
      %p269 = pneg %p268
      // Predicated region
      $region9: #{_lambda_.1} parent=5 // pred_check
        _
      $region10: #{_lambda_.1} parent=5 // pred_check_branch
        %271 = sbr.rel (%p268) target = $region12
      $region11: #{_lambda_.1} parent=5 // pred_region
        %s272 = ssub.s32 %s18, 1
        // Predicated region
        $region13: #{_lambda_.1} parent=11 // pred_check
          %p273 = pneg %p65
        $region14: #{_lambda_.1} parent=11 // pred_check_branch
          %275 = sbr.rel (%p273) target = $region16
        $region15: #{_lambda_.1} parent=11 // pred_region
          _
        $region16: #{_lambda_.1} parent=11 // pred_fallthru
          _
        // Predicated region
        $region17: #{_lambda_.1} parent=11 // pred_check
          %p276 = pneg %p86
        $region18: #{_lambda_.1} parent=11 // pred_check_branch
          %278 = sbr.rel (%p276) target = $region20
        $region19: #{_lambda_.1} parent=11 // pred_region
          _
        $region20: #{_lambda_.1} parent=11 // pred_fallthru
          _
        // Predicated region
        $region21: #{_lambda_.1} parent=11 // pred_check
          %p279 = pneg %p159
        $region22: #{_lambda_.1} parent=11 // pred_check_branch
          %281 = sbr.rel (%p279) target = $region24
        $region23: #{_lambda_.1} parent=11 // pred_region
          _
        $region24: #{_lambda_.1} parent=11 // pred_fallthru
          _
        // Predicated region
        $region25: #{_lambda_.1} parent=11 // pred_check
          %p282 = pneg %p180
        $region26: #{_lambda_.1} parent=11 // pred_check_branch
          %284 = sbr.rel (%p282) target = $region28
        $region27: #{_lambda_.1} parent=11 // pred_region
          _
        $region28: #{_lambda_.1} parent=11 // pred_fallthru
          _
      $region12: #{_lambda_.1} parent=5 // pred_fallthru
        _
      %p285 = scmp.lt.s32.totalorder %s18, 2
      // Predicated region
      $region29: #{_lambda_.1} parent=5 // pred_check
        %p286 = pneg %p285
      $region30: #{_lambda_.1} parent=5 // pred_check_branch
        %288 = sbr.rel (%p286) target = $region32
      $region31: #{_lambda_.1} parent=5 // pred_region
        // Predicated region
        $region33: #{_lambda_.1} parent=31 // pred_check
          %p289 = pneg %p38
        $region34: #{_lambda_.1} parent=31 // pred_check_branch
          %291 = sbr.rel (%p289) target = $region36
        $region35: #{_lambda_.1} parent=31 // pred_region
          %s292 = smul.u32 16, %s18
          %p293 = scmp.lt.s32.totalorder %s292, 31
          %s294 = scalar_select %p293, %s292, 31
          %s295 = smul.addr %s294, 3
          %s296 = smul.addr %s295, 4
          %s297 = scalar_lea.vmem %s0, %s296
          %s298 = smul.u32 16, %s18
        $region36: #{_lambda_.1} parent=31 // pred_fallthru
          _
        // Predicated region
        $region37: #{_lambda_.1} parent=31 // pred_check
          %p299 = pneg %p106
        $region38: #{_lambda_.1} parent=31 // pred_check_branch
          %301 = sbr.rel (%p299) target = $region40
        $region39: #{_lambda_.1} parent=31 // pred_region
          %s302 = smul.u32 2, %s18
          %p303 = scmp.lt.s32.totalorder %s302, 3
          %s304 = scalar_select %p303, %s302, 3
          %s305 = scalar_lea.vmem %s3, %s304
          %s306 = smul.u32 2, %s18
        $region40: #{_lambda_.1} parent=31 // pred_fallthru
          _
        // Predicated region
        $region41: #{_lambda_.1} parent=31 // pred_check
          %p307 = pneg %p132
        $region42: #{_lambda_.1} parent=31 // pred_check_branch
          %309 = sbr.rel (%p307) target = $region44
        $region43: #{_lambda_.1} parent=31 // pred_region
          %s310 = smul.u32 2, %s18
          %p311 = scmp.lt.s32.totalorder %s310, 3
          %s312 = scalar_select %p311, %s310, 3
          %s313 = scalar_lea.vmem %s4, %s312
          %s314 = smul.u32 2, %s18
        $region44: #{_lambda_.1} parent=31 // pred_fallthru
          _
        // Predicated region
        $region45: #{_lambda_.1} parent=31 // pred_check
          %p315 = pneg %p200
        $region46: #{_lambda_.1} parent=31 // pred_check_branch
          %317 = sbr.rel (%p315) target = $region48
        $region47: #{_lambda_.1} parent=31 // pred_region
          %s318 = smul.u32 2, %s18
          %p319 = scmp.lt.s32.totalorder %s318, 3
          %s320 = scalar_select %p319, %s318, 3
          %s321 = smul.addr %s320, 4
          %s322 = scalar_lea.vmem %s7, %s321
          %s323 = smul.u32 2, %s18
        $region48: #{_lambda_.1} parent=31 // pred_fallthru
          _
        // Predicated region
        $region49: #{_lambda_.1} parent=31 // pred_check
          %p324 = pneg %p226
        $region50: #{_lambda_.1} parent=31 // pred_check_branch
          %326 = sbr.rel (%p324) target = $region52
        $region51: #{_lambda_.1} parent=31 // pred_region
          %s327 = smul.u32 2, %s18
          %p328 = scmp.lt.s32.totalorder %s327, 3
          %s329 = scalar_select %p328, %s327, 3
          %s330 = smul.addr %s329, 4
          %s331 = scalar_lea.vmem %s8, %s330
          %s332 = smul.u32 2, %s18
        $region52: #{_lambda_.1} parent=31 // pred_fallthru
          _
      $region32: #{_lambda_.1} parent=5 // pred_fallthru
        _
      %p333 = scmp.le.s32.totalorder 1, %s18
      %p334 = scmp.lt.s32.totalorder %s18, 3
      %p335 = pnand %p333, %p334
      %p336 = pneg %p335
      // Predicated region
      $region53: #{_lambda_.1} parent=5 // pred_check
        _
      $region54: #{_lambda_.1} parent=5 // pred_check_branch
        %338 = sbr.rel (%p335) target = $region56
      $region55: #{_lambda_.1} parent=5 // pred_region
        %s339 = ssub.s32 %s18, 1
        %s340 = smul.u32 16, %s23
        %p341 = scmp.lt.s32.totalorder %s340, 31
        %s342 = scalar_select %p341, %s340, 31
        %s343 = smul.addr %s342, 3
        %s344 = smul.addr %s343, 4
        %s345 = scalar_lea.vmem %s0, %s344
        %p346 = pneg %p44
        %p347 = pneg %p41
        %p348 = pneg %p65
        %p349 = pneg %p62
        %p350 = pneg %p86
        %p351 = pneg %p83
        %s352 = smul.u32 2, %s23
        %p353 = scmp.lt.s32.totalorder %s352, 3
        %s354 = scalar_select %p353, %s352, 3
        %s355 = scalar_lea.vmem %s3, %s354
        %p356 = pneg %p112
        %p357 = pneg %p109
        %s358 = smul.u32 2, %s23
        %p359 = scmp.lt.s32.totalorder %s358, 3
        %s360 = scalar_select %p359, %s358, 3
        %s361 = scalar_lea.vmem %s4, %s360
        %p362 = pneg %p138
        %p363 = pneg %p135
        %p364 = pneg %p159
        %p365 = pneg %p156
        %p366 = pneg %p180
        %p367 = pneg %p177
        %s368 = smul.u32 2, %s23
        %p369 = scmp.lt.s32.totalorder %s368, 3
        %s370 = scalar_select %p369, %s368, 3
        %s371 = smul.addr %s370, 4
        %s372 = scalar_lea.vmem %s7, %s371
        %p373 = pneg %p206
        %p374 = pneg %p203
        %s375 = smul.u32 2, %s23
        %p376 = scmp.lt.s32.totalorder %s375, 3
        %s377 = scalar_select %p376, %s375, 3
        %s378 = smul.addr %s377, 4
        %s379 = scalar_lea.vmem %s8, %s378
        %p380 = pneg %p232
        %p381 = pneg %p229
        %p382 = pneg %p258
        %p383 = pneg %p255
        %s384 = sand.u32 %s245, 1
        %s385 = scalar_lea.sflag [#allocation3], %s384
        %s386 = sand.u32 %s245, 1
        %s387 = smul.addr %s386, 256
        %s388 = scalar_lea.vmem [#allocation2], %s387
        %s389 = smul.u32 16, %s23
        %p390 = scmp.lt.s32.totalorder %s389, 31
        %s391 = scalar_select %p390, %s389, 31
        %s392 = smul.addr %s391, 3
        %s393 = smul.addr %s392, 4
        %s394 = scalar_lea.vmem %s0, %s393
        %s395 = smul.u32 16, %s23
        %s396 = smul.u32 2, %s23
        %p397 = scmp.lt.s32.totalorder %s396, 3
        %s398 = scalar_select %p397, %s396, 3
        %s399 = scalar_lea.vmem %s3, %s398
        %s400 = smul.u32 2, %s23
        %s401 = smul.u32 2, %s23
        %p402 = scmp.lt.s32.totalorder %s401, 3
        %s403 = scalar_select %p402, %s401, 3
        %s404 = scalar_lea.vmem %s4, %s403
        %s405 = smul.u32 2, %s23
        %s406 = smul.u32 2, %s23
        %p407 = scmp.lt.s32.totalorder %s406, 3
        %s408 = scalar_select %p407, %s406, 3
        %s409 = smul.addr %s408, 4
        %s410 = scalar_lea.vmem %s7, %s409
        %s411 = smul.u32 2, %s23
        %s412 = smul.u32 2, %s23
        %p413 = scmp.lt.s32.totalorder %s412, 3
        %s414 = scalar_select %p413, %s412, 3
        %s415 = smul.addr %s414, 4
        %s416 = scalar_lea.vmem %s8, %s415
        %s417 = smul.u32 2, %s23
        %s418 = smul.u32 2, %s23
        %v420 = vld [vmem:[%s394] sm:$0xff]
        %v421 = vld [vmem:[%s394 + $0x8] sm:$0xf]
        %v422 = vld [vmem:[%s394 + $0xc] sm:$0xff]
        %v423 = vld [vmem:[%s394 + $0x14] sm:$0xf]
        %v424 = vld [vmem:[%s394 + $0x18] sm:$0xff]
        %v425 = vld [vmem:[%s394 + $0x20] sm:$0xf]
        %v426 = vld [vmem:[%s394 + $0x24] sm:$0xff]
        %v427 = vld [vmem:[%s394 + $0x2c] sm:$0xf]
        %v428 = vld [vmem:[%s394 + $0x30] sm:$0xff]
        %v429 = vld [vmem:[%s394 + $0x38] sm:$0xf]
        %v430 = vld [vmem:[%s394 + $0x3c] sm:$0xff]
        %v431 = vld [vmem:[%s394 + $0x44] sm:$0xf]
        %v432 = vld [vmem:[%s394 + $0x48] sm:$0xff]
        %v433 = vld [vmem:[%s394 + $0x50] sm:$0xf]
        %v434 = vld [vmem:[%s394 + $0x54] sm:$0xff]
        %v435 = vld [vmem:[%s394 + $0x5c] sm:$0xf]
        %v436 = vld [vmem:[%s394 + $0x60] sm:$0xff]
        %v437 = vld [vmem:[%s394 + $0x68] sm:$0xf]
        %v438 = vld [vmem:[%s394 + $0x6c] sm:$0xff]
        %v439 = vld [vmem:[%s394 + $0x74] sm:$0xf]
        %v440 = vld [vmem:[%s394 + $0x78] sm:$0xff]
        %v441 = vld [vmem:[%s394 + $0x80] sm:$0xf]
        %v442 = vld [vmem:[%s394 + $0x84] sm:$0xff]
        %v443 = vld [vmem:[%s394 + $0x8c] sm:$0xf]
        %v444 = vld [vmem:[%s394 + $0x90] sm:$0xff]
        %v445 = vld [vmem:[%s394 + $0x98] sm:$0xf]
        %v446 = vld [vmem:[%s394 + $0x9c] sm:$0xff]
        %v447 = vld [vmem:[%s394 + $0xa4] sm:$0xf]
        %v448 = vld [vmem:[%s394 + $0xa8] sm:$0xff]
        %v449 = vld [vmem:[%s394 + $0xb0] sm:$0xf]
        %v450 = vld [vmem:[%s394 + $0xb4] sm:$0xff]
        %v451 = vld [vmem:[%s394 + $0xbc] sm:$0xf]
        %v452 = vld [vmem:[%s1] sm:$0xf]
        %v453 = vld [vmem:[%s1 + $0x4] sm:$0xf]
        %v454 = vld [vmem:[%s1 + $0x8] sm:$0xf]
        %v455 = vld [vmem:[%s1 + $0xc] sm:$0xf]
        %v456 = vld [vmem:[%s1 + $0x10] sm:$0xf]
        %v457 = vld [vmem:[%s1 + $0x14] sm:$0xf]
        %v458 = vld [vmem:[%s1 + $0x18] sm:$0xf]
        %v459 = vld [vmem:[%s1 + $0x1c] sm:$0xf]
        %v460 = vld [vmem:[%s1 + $0x20] sm:$0xf]
        %v461 = vld [vmem:[%s1 + $0x24] sm:$0xf]
        %v462 = vld [vmem:[%s1 + $0x28] sm:$0xf]
        %v463 = vld [vmem:[%s1 + $0x2c] sm:$0xf]
        %v464 = vld [vmem:[%s1 + $0x30] sm:$0xf]
        %v465 = vld [vmem:[%s1 + $0x34] sm:$0xf]
        %v466 = vld [vmem:[%s1 + $0x38] sm:$0xf]
        %v467 = vld [vmem:[%s1 + $0x3c] sm:$0xf]
        %v468 = vld [vmem:[%s1 + $0x40] sm:$0xf]
        %v469 = vld [vmem:[%s1 + $0x44] sm:$0xf]
        %v470 = vld [vmem:[%s1 + $0x48] sm:$0xf]
        %v471 = vld [vmem:[%s1 + $0x4c] sm:$0xf]
        %v472 = vld [vmem:[%s1 + $0x50] sm:$0xf]
        %v473 = vld [vmem:[%s1 + $0x54] sm:$0xf]
        %v474 = vld [vmem:[%s1 + $0x58] sm:$0xf]
        %v475 = vld [vmem:[%s1 + $0x5c] sm:$0xf]
        %v476 = vld [vmem:[%s1 + $0x60] sm:$0xf]
        %v477 = vld [vmem:[%s1 + $0x64] sm:$0xf]
        %v478 = vld [vmem:[%s1 + $0x68] sm:$0xf]
        %v479 = vld [vmem:[%s1 + $0x6c] sm:$0xf]
        %v480 = vld [vmem:[%s1 + $0x70] sm:$0xf]
        %v481 = vld [vmem:[%s1 + $0x74] sm:$0xf]
        %v482 = vld [vmem:[%s1 + $0x78] sm:$0xf]
        %v483 = vld [vmem:[%s1 + $0x7c] sm:$0xf]
        %v484 = vld [vmem:[%s1 + $0x80] sm:$0xf]
        %v485 = vld [vmem:[%s1 + $0x84] sm:$0xf]
        %v486 = vld [vmem:[%s1 + $0x88] sm:$0xf]
        %v487 = vld [vmem:[%s1 + $0x8c] sm:$0xf]
        %v488 = vld [vmem:[%s2] sm:$0x1]
        %v490 = vlaneseq
        %v491 = vshrl.u32 %v490, 7
        %v492 = vsub.s32 0, %v491
        %v493 = vrot.slane %v488, %v492
        %v527 = vunpack.c.l.b16 %v420
        %v528 = vunpack.c.h.b16 %v420
        %v529 = vunpack.c.l.b16 %v421
        %v530 = vunpack.c.l.b16 %v422
        %v531 = vunpack.c.h.b16 %v422
        %v532 = vunpack.c.l.b16 %v423
        %v533 = vunpack.c.l.b16 %v424
        %v534 = vunpack.c.h.b16 %v424
        %v535 = vunpack.c.l.b16 %v425
        %v536 = vunpack.c.l.b16 %v426
        %v537 = vunpack.c.h.b16 %v426
        %v538 = vunpack.c.l.b16 %v427
        %v539 = vunpack.c.l.b16 %v428
        %v540 = vunpack.c.h.b16 %v428
        %v541 = vunpack.c.l.b16 %v429
        %v542 = vunpack.c.l.b16 %v430
        %v543 = vunpack.c.h.b16 %v430
        %v544 = vunpack.c.l.b16 %v431
        %v545 = vunpack.c.l.b16 %v432
        %v546 = vunpack.c.h.b16 %v432
        %v547 = vunpack.c.l.b16 %v433
        %v548 = vunpack.c.l.b16 %v434
        %v549 = vunpack.c.h.b16 %v434
        %v550 = vunpack.c.l.b16 %v435
        %v551 = vunpack.c.l.b16 %v436
        %v552 = vunpack.c.h.b16 %v436
        %v553 = vunpack.c.l.b16 %v437
        %v554 = vunpack.c.l.b16 %v438
        %v555 = vunpack.c.h.b16 %v438
        %v556 = vunpack.c.l.b16 %v439
        %v557 = vunpack.c.l.b16 %v440
        %v558 = vunpack.c.h.b16 %v440
        %v559 = vunpack.c.l.b16 %v441
        %v560 = vunpack.c.l.b16 %v442
        %v561 = vunpack.c.h.b16 %v442
        %v562 = vunpack.c.l.b16 %v443
        %v563 = vunpack.c.l.b16 %v444
        %v564 = vunpack.c.h.b16 %v444
        %v565 = vunpack.c.l.b16 %v445
        %v566 = vunpack.c.l.b16 %v446
        %v567 = vunpack.c.h.b16 %v446
        %v568 = vunpack.c.l.b16 %v447
        %v569 = vunpack.c.l.b16 %v448
        %v570 = vunpack.c.h.b16 %v448
        %v571 = vunpack.c.l.b16 %v449
        %v572 = vunpack.c.l.b16 %v450
        %v573 = vunpack.c.h.b16 %v450
        %v574 = vunpack.c.l.b16 %v451
        %v575 = vpack.c.b16 %v530, %v527
        %v576 = vpack.c.b16 %v531, %v528
        %v577 = vpack.c.b16 %v532, %v529
        %v578 = vpack.c.b16 %v536, %v533
        %v579 = vpack.c.b16 %v537, %v534
        %v580 = vpack.c.b16 %v538, %v535
        %v581 = vpack.c.b16 %v542, %v539
        %v582 = vpack.c.b16 %v543, %v540
        %v583 = vpack.c.b16 %v544, %v541
        %v584 = vpack.c.b16 %v548, %v545
        %v585 = vpack.c.b16 %v549, %v546
        %v586 = vpack.c.b16 %v550, %v547
        %v587 = vpack.c.b16 %v554, %v551
        %v588 = vpack.c.b16 %v555, %v552
        %v589 = vpack.c.b16 %v556, %v553
        %v590 = vpack.c.b16 %v560, %v557
        %v591 = vpack.c.b16 %v561, %v558
        %v592 = vpack.c.b16 %v562, %v559
        %v593 = vpack.c.b16 %v566, %v563
        %v594 = vpack.c.b16 %v567, %v564
        %v595 = vpack.c.b16 %v568, %v565
        %v596 = vpack.c.b16 %v572, %v569
        %v597 = vpack.c.b16 %v573, %v570
        %v598 = vpack.c.b16 %v574, %v571
        %v651 = vunpack.c.l.b16 %v452
        %v652 = vunpack.c.l.b16 %v453
        %v653 = vunpack.c.l.b16 %v454
        %v654 = vunpack.c.l.b16 %v455
        %v655 = vunpack.c.l.b16 %v456
        %v656 = vunpack.c.l.b16 %v457
        %v657 = vunpack.c.l.b16 %v458
        %v658 = vunpack.c.l.b16 %v459
        %v659 = vunpack.c.l.b16 %v460
        %v660 = vunpack.c.l.b16 %v461
        %v661 = vunpack.c.l.b16 %v462
        %v662 = vunpack.c.l.b16 %v463
        %v663 = vunpack.c.l.b16 %v464
        %v664 = vunpack.c.l.b16 %v465
        %v665 = vunpack.c.l.b16 %v466
        %v666 = vunpack.c.l.b16 %v467
        %v667 = vunpack.c.l.b16 %v468
        %v668 = vunpack.c.l.b16 %v469
        %v669 = vunpack.c.l.b16 %v470
        %v670 = vunpack.c.l.b16 %v471
        %v671 = vunpack.c.l.b16 %v472
        %v672 = vunpack.c.l.b16 %v473
        %v673 = vunpack.c.l.b16 %v474
        %v674 = vunpack.c.l.b16 %v475
        %v675 = vunpack.c.l.b16 %v476
        %v676 = vunpack.c.l.b16 %v477
        %v677 = vunpack.c.l.b16 %v478
        %v678 = vunpack.c.l.b16 %v479
        %v679 = vunpack.c.l.b16 %v480
        %v680 = vunpack.c.l.b16 %v481
        %v681 = vunpack.c.l.b16 %v482
        %v682 = vunpack.c.l.b16 %v483
        %v683 = vunpack.c.l.b16 %v484
        %v684 = vunpack.c.l.b16 %v485
        %v685 = vunpack.c.l.b16 %v486
        %v686 = vunpack.c.l.b16 %v487
        %v687 = vpack.c.b16 %v652, %v651
        %v688 = vpack.c.b16 %v654, %v653
        %v689 = vpack.c.b16 %v656, %v655
        %v690 = vpack.c.b16 %v658, %v657
        %v691 = vpack.c.b16 %v660, %v659
        %v692 = vpack.c.b16 %v662, %v661
        %v693 = vpack.c.b16 %v664, %v663
        %v694 = vpack.c.b16 %v666, %v665
        %v695 = vpack.c.b16 %v668, %v667
        %v696 = vpack.c.b16 %v670, %v669
        %v697 = vpack.c.b16 %v672, %v671
        %v698 = vpack.c.b16 %v674, %v673
        %v699 = vpack.c.b16 %v676, %v675
        %v700 = vpack.c.b16 %v678, %v677
        %v701 = vpack.c.b16 %v680, %v679
        %v702 = vpack.c.b16 %v682, %v681
        %v703 = vpack.c.b16 %v684, %v683
        %v704 = vpack.c.b16 %v686, %v685
        %vm723 = vcmask 261120
        %v725 = vsel %vm723, %v577, 0
        %v728 = vsel %vm723, %v580, 0
        %v731 = vsel %vm723, %v583, 0
        %v734 = vsel %vm723, %v586, 0
        %v737 = vsel %vm723, %v589, 0
        %v740 = vsel %vm723, %v592, 0
        %v743 = vsel %vm723, %v595, 0
        %v746 = vsel %vm723, %v598, 0
        %748 = vmatprep.subr.bf16.mxu0 0
        %749 = vmatpush1.bf16.msra.mxu0 %v687
        %750 = vmatprep.subr.bf16.mxu0 0
        %751 = vmatpush1.bf16.msra.mxu0 %v688
        %752 = vmatprep.subr.bf16.mxu0 0
        %753 = vmatpush1.bf16.msra.mxu0 %v689
        %754 = vmatprep.subr.bf16.mxu0 0
        %755 = vmatpush1.bf16.msra.mxu0 %v690
        %756 = vmatprep.subr.bf16.mxu0 0
        %757 = vmatpush1.bf16.msra.mxu0 %v691
        %758 = vmatprep.subr.bf16.mxu0 0
        %759 = vmatpush1.bf16.msra.mxu0 %v692
        %760 = vmatprep.subr.bf16.mxu0 0
        %761 = vmatpush1.bf16.msra.mxu0 %v693
        %762 = vmatprep.subr.bf16.mxu0 0
        %763 = vmatpush1.bf16.msra.mxu0 %v694
        %764 = vmatprep.subr.bf16.mxu0 0
        %765 = vmatpush1.bf16.msra.mxu0 %v695
        %766 = vmatprep.subr.bf16.mxu0 0
        %767 = vmatpush1.bf16.msra.mxu0 %v696
        %768 = vmatprep.subr.bf16.mxu0 0
        %769 = vmatpush1.bf16.msra.mxu0 %v697
        %770 = vmatprep.subr.bf16.mxu0 0
        %771 = vmatpush1.bf16.msra.mxu0 %v698
        %772 = vmatprep.subr.bf16.mxu0 0
        %773 = vmatpush1.bf16.msra.mxu0 %v699
        %774 = vmatprep.subr.bf16.mxu0 0
        %775 = vmatpush1.bf16.msra.mxu0 %v700
        %776 = vmatprep.subr.bf16.mxu0 0
        %777 = vmatpush1.bf16.msra.mxu0 %v701
        %778 = vmatprep.subr.bf16.mxu0 0
        %779 = vmatpush1.bf16.msra.mxu0 %v702
        %780 = vmatprep.mubr.bf16.mxu0 %v576
        %781 = vmatmul.mubr.bf16.gmra.mrb[0].mxu0 %v575
        %v782 = vpop.f32.mrb[0].mxu0
        %v783 = vadd.f32 %v493, %v782
        %v784 = vpop.f32.mrb[0].mxu0
        %v785 = vpop.f32.mrb[0].mxu0
        %v786 = vadd.f32 %v493, %v785
        %v787 = vpop.f32.mrb[0].mxu0
        %788 = vmatprep.mubr.bf16.mxu0 %v579
        %789 = vmatmul.mubr.bf16.gmra.mrb[0].mxu0 %v578
        %v790 = vpop.f32.mrb[0].mxu0
        %v791 = vadd.f32 %v493, %v790
        %v792 = vpop.f32.mrb[0].mxu0
        %v793 = vpop.f32.mrb[0].mxu0
        %v794 = vadd.f32 %v493, %v793
        %v795 = vpop.f32.mrb[0].mxu0
        %796 = vmatprep.mubr.bf16.mxu0 %v582
        %797 = vmatmul.mubr.bf16.gmra.mrb[0].mxu0 %v581
        %v798 = vpop.f32.mrb[0].mxu0
        %v799 = vadd.f32 %v493, %v798
        %v800 = vpop.f32.mrb[0].mxu0
        %v801 = vpop.f32.mrb[0].mxu0
        %v802 = vadd.f32 %v493, %v801
        %v803 = vpop.f32.mrb[0].mxu0
        %804 = vmatprep.mubr.bf16.mxu0 %v585
        %805 = vmatmul.mubr.bf16.gmra.mrb[0].mxu0 %v584
        %v806 = vpop.f32.mrb[0].mxu0
        %v807 = vadd.f32 %v493, %v806
        %v808 = vpop.f32.mrb[0].mxu0
        %v809 = vpop.f32.mrb[0].mxu0
        %v810 = vadd.f32 %v493, %v809
        %v811 = vpop.f32.mrb[0].mxu0
        %812 = vmatprep.mubr.bf16.mxu0 %v588
        %813 = vmatmul.mubr.bf16.gmra.mrb[0].mxu0 %v587
        %v814 = vpop.f32.mrb[0].mxu0
        %v815 = vadd.f32 %v493, %v814
        %v816 = vpop.f32.mrb[0].mxu0
        %v817 = vpop.f32.mrb[0].mxu0
        %v818 = vadd.f32 %v493, %v817
        %v819 = vpop.f32.mrb[0].mxu0
        %820 = vmatprep.mubr.bf16.mxu0 %v591
        %821 = vmatmul.mubr.bf16.gmra.mrb[0].mxu0 %v590
        %v822 = vpop.f32.mrb[0].mxu0
        %v823 = vadd.f32 %v493, %v822
        %v824 = vpop.f32.mrb[0].mxu0
        %v825 = vpop.f32.mrb[0].mxu0
        %v826 = vadd.f32 %v493, %v825
        %v827 = vpop.f32.mrb[0].mxu0
        %828 = vmatprep.mubr.bf16.mxu0 %v594
        %829 = vmatmul.mubr.bf16.gmra.mrb[0].mxu0 %v593
        %v830 = vpop.f32.mrb[0].mxu0
        %v831 = vadd.f32 %v493, %v830
        %v832 = vpop.f32.mrb[0].mxu0
        %v833 = vpop.f32.mrb[0].mxu0
        %v834 = vadd.f32 %v493, %v833
        %v835 = vpop.f32.mrb[0].mxu0
        %836 = vmatprep.mubr.bf16.mxu0 %v597
        %837 = vmatmul.mubr.bf16.gmra.mrb[0].mxu0 %v596
        %v838 = vpop.f32.mrb[0].mxu0
        %v839 = vadd.f32 %v493, %v838
        %v840 = vpop.f32.mrb[0].mxu0
        %v841 = vpop.f32.mrb[0].mxu0
        %v842 = vadd.f32 %v493, %v841
        %v843 = vpop.f32.mrb[0].mxu0
        %844 = vdwg.mxu0
        %845 = vmatprep.subr.bf16.mxu0 0
        %846 = vmatpush1.bf16.msra.mxu0 %v703
        %847 = vmatprep.subr.bf16.mxu0 0
        %848 = vmatpush1.bf16.msra.mxu0 %v704
        %849 = vmatprep.subr.bf16.mxu0 0
        %850 = vmatpush1.bf16.msra.mxu0 0
        %851 = vmatprep.subr.bf16.mxu0 0
        %852 = vmatpush1.bf16.msra.mxu0 0
        %853 = vmatprep.subr.bf16.mxu0 0
        %854 = vmatpush1.bf16.msra.mxu0 0
        %855 = vmatprep.subr.bf16.mxu0 0
        %856 = vmatpush1.bf16.msra.mxu0 0
        %857 = vmatprep.subr.bf16.mxu0 0
        %858 = vmatpush1.bf16.msra.mxu0 0
        %859 = vmatprep.subr.bf16.mxu0 0
        %860 = vmatpush1.bf16.msra.mxu0 0
        %861 = vmatprep.subr.bf16.mxu0 0
        %862 = vmatpush1.bf16.msra.mxu0 0
        %863 = vmatprep.subr.bf16.mxu0 0
        %864 = vmatpush1.bf16.msra.mxu0 0
        %865 = vmatprep.subr.bf16.mxu0 0
        %866 = vmatpush1.bf16.msra.mxu0 0
        %867 = vmatprep.subr.bf16.mxu0 0
        %868 = vmatpush1.bf16.msra.mxu0 0
        %869 = vmatprep.subr.bf16.mxu0 0
        %870 = vmatpush1.bf16.msra.mxu0 0
        %871 = vmatprep.subr.bf16.mxu0 0
        %872 = vmatpush1.bf16.msra.mxu0 0
        %873 = vmatprep.subr.bf16.mxu0 0
        %874 = vmatpush1.bf16.msra.mxu0 0
        %875 = vmatprep.subr.bf16.mxu0 0
        %876 = vmatpush1.bf16.msra.mxu0 0
        %877 = vmatprep.mubr.bf16.mxu0 0
        %878 = vmatmul.mubr.bf16.gmra.mrb[0].mxu0 %v725
        %v879 = vpop.f32.mrb[0].mxu0
        %v880 = vadd.f32 %v783, %v879
        %v881 = vpop.f32.mrb[0].mxu0
        %v882 = vpop.f32.mrb[0].mxu0
        %v883 = vadd.f32 %v786, %v882
        %v884 = vpop.f32.mrb[0].mxu0
        %885 = vmatprep.mubr.bf16.mxu0 0
        %886 = vmatmul.mubr.bf16.gmra.mrb[0].mxu0 %v728
        %v887 = vpop.f32.mrb[0].mxu0
        %v888 = vadd.f32 %v791, %v887
        %v889 = vpop.f32.mrb[0].mxu0
        %v890 = vpop.f32.mrb[0].mxu0
        %v891 = vadd.f32 %v794, %v890
        %v892 = vpop.f32.mrb[0].mxu0
        %893 = vmatprep.mubr.bf16.mxu0 0
        %894 = vmatmul.mubr.bf16.gmra.mrb[0].mxu0 %v731
        %v895 = vpop.f32.mrb[0].mxu0
        %v896 = vadd.f32 %v799, %v895
        %v897 = vpop.f32.mrb[0].mxu0
        %v898 = vpop.f32.mrb[0].mxu0
        %v899 = vadd.f32 %v802, %v898
        %v900 = vpop.f32.mrb[0].mxu0
        %901 = vmatprep.mubr.bf16.mxu0 0
        %902 = vmatmul.mubr.bf16.gmra.mrb[0].mxu0 %v734
        %v903 = vpop.f32.mrb[0].mxu0
        %v904 = vadd.f32 %v807, %v903
        %v905 = vpop.f32.mrb[0].mxu0
        %v906 = vpop.f32.mrb[0].mxu0
        %v907 = vadd.f32 %v810, %v906
        %v908 = vpop.f32.mrb[0].mxu0
        %909 = vmatprep.mubr.bf16.mxu0 0
        %910 = vmatmul.mubr.bf16.gmra.mrb[0].mxu0 %v737
        %v911 = vpop.f32.mrb[0].mxu0
        %v912 = vadd.f32 %v815, %v911
        %v913 = vpop.f32.mrb[0].mxu0
        %v914 = vpop.f32.mrb[0].mxu0
        %v915 = vadd.f32 %v818, %v914
        %v916 = vpop.f32.mrb[0].mxu0
        %917 = vmatprep.mubr.bf16.mxu0 0
        %918 = vmatmul.mubr.bf16.gmra.mrb[0].mxu0 %v740
        %v919 = vpop.f32.mrb[0].mxu0
        %v920 = vadd.f32 %v823, %v919
        %v921 = vpop.f32.mrb[0].mxu0
        %v922 = vpop.f32.mrb[0].mxu0
        %v923 = vadd.f32 %v826, %v922
        %v924 = vpop.f32.mrb[0].mxu0
        %925 = vmatprep.mubr.bf16.mxu0 0
        %926 = vmatmul.mubr.bf16.gmra.mrb[0].mxu0 %v743
        %v927 = vpop.f32.mrb[0].mxu0
        %v928 = vadd.f32 %v831, %v927
        %v929 = vpop.f32.mrb[0].mxu0
        %v930 = vpop.f32.mrb[0].mxu0
        %v931 = vadd.f32 %v834, %v930
        %v932 = vpop.f32.mrb[0].mxu0
        %933 = vmatprep.mubr.bf16.mxu0 0
        %934 = vmatmul.mubr.bf16.gmra.mrb[0].mxu0 %v746
        %v935 = vpop.f32.mrb[0].mxu0
        %v936 = vadd.f32 %v839, %v935
        %v937 = vpop.f32.mrb[0].mxu0
        %v938 = vpop.f32.mrb[0].mxu0
        %v939 = vadd.f32 %v842, %v938
        %v940 = vpop.f32.mrb[0].mxu0
        %941 = vdwg.mxu0
        %v942 = vsub.f32 0.0, %v880
        %v943 = vsub.f32 0.0, %v883
        %v944 = vsub.f32 0.0, %v888
        %v945 = vsub.f32 0.0, %v891
        %v946 = vsub.f32 0.0, %v896
        %v947 = vsub.f32 0.0, %v899
        %v948 = vsub.f32 0.0, %v904
        %v949 = vsub.f32 0.0, %v907
        %v950 = vsub.f32 0.0, %v912
        %v951 = vsub.f32 0.0, %v915
        %v952 = vsub.f32 0.0, %v920
        %v953 = vsub.f32 0.0, %v923
        %v954 = vsub.f32 0.0, %v928
        %v955 = vsub.f32 0.0, %v931
        %v956 = vsub.f32 0.0, %v936
        %v957 = vsub.f32 0.0, %v939
        %v958 = vmul.f32 %v942, 1.442695
        %v959 = vpow.pop %v958
        %v960 = vmul.f32 %v943, 1.442695
        %v961 = vpow.pop %v960
        %v962 = vmul.f32 %v944, 1.442695
        %v963 = vpow.pop %v962
        %v964 = vmul.f32 %v945, 1.442695
        %v965 = vpow.pop %v964
        %v966 = vmul.f32 %v946, 1.442695
        %v967 = vpow.pop %v966
        %v968 = vmul.f32 %v947, 1.442695
        %v969 = vpow.pop %v968
        %v970 = vmul.f32 %v948, 1.442695
        %v971 = vpow.pop %v970
        %v972 = vmul.f32 %v949, 1.442695
        %v973 = vpow.pop %v972
        %v974 = vmul.f32 %v950, 1.442695
        %v975 = vpow.pop %v974
        %v976 = vmul.f32 %v951, 1.442695
        %v977 = vpow.pop %v976
        %v978 = vmul.f32 %v952, 1.442695
        %v979 = vpow.pop %v978
        %v980 = vmul.f32 %v953, 1.442695
        %v981 = vpow.pop %v980
        %v982 = vmul.f32 %v954, 1.442695
        %v983 = vpow.pop %v982
        %v984 = vmul.f32 %v955, 1.442695
        %v985 = vpow.pop %v984
        %v986 = vmul.f32 %v956, 1.442695
        %v987 = vpow.pop %v986
        %v988 = vmul.f32 %v957, 1.442695
        %v989 = vpow.pop %v988
        %v990 = vadd.f32 %v959, 1.0
        %v991 = vadd.f32 %v961, 1.0
        %v992 = vadd.f32 %v963, 1.0
        %v993 = vadd.f32 %v965, 1.0
        %v994 = vadd.f32 %v967, 1.0
        %v995 = vadd.f32 %v969, 1.0
        %v996 = vadd.f32 %v971, 1.0
        %v997 = vadd.f32 %v973, 1.0
        %v998 = vadd.f32 %v975, 1.0
        %v999 = vadd.f32 %v977, 1.0
        %v1000 = vadd.f32 %v979, 1.0
        %v1001 = vadd.f32 %v981, 1.0
        %v1002 = vadd.f32 %v983, 1.0
        %v1003 = vadd.f32 %v985, 1.0
        %v1004 = vadd.f32 %v987, 1.0
        %v1005 = vadd.f32 %v989, 1.0
        %v1006 = vrcp.pop %v990
        %v1007 = vmul.f32 1.0, %v1006
        %v1008 = vrcp.pop %v991
        %v1009 = vmul.f32 1.0, %v1008
        %v1010 = vrcp.pop %v992
        %v1011 = vmul.f32 1.0, %v1010
        %v1012 = vrcp.pop %v993
        %v1013 = vmul.f32 1.0, %v1012
        %v1014 = vrcp.pop %v994
        %v1015 = vmul.f32 1.0, %v1014
        %v1016 = vrcp.pop %v995
        %v1017 = vmul.f32 1.0, %v1016
        %v1018 = vrcp.pop %v996
        %v1019 = vmul.f32 1.0, %v1018
        %v1020 = vrcp.pop %v997
        %v1021 = vmul.f32 1.0, %v1020
        %v1022 = vrcp.pop %v998
        %v1023 = vmul.f32 1.0, %v1022
        %v1024 = vrcp.pop %v999
        %v1025 = vmul.f32 1.0, %v1024
        %v1026 = vrcp.pop %v1000
        %v1027 = vmul.f32 1.0, %v1026
        %v1028 = vrcp.pop %v1001
        %v1029 = vmul.f32 1.0, %v1028
        %v1030 = vrcp.pop %v1002
        %v1031 = vmul.f32 1.0, %v1030
        %v1032 = vrcp.pop %v1003
        %v1033 = vmul.f32 1.0, %v1032
        %v1034 = vrcp.pop %v1004
        %v1035 = vmul.f32 1.0, %v1034
        %v1036 = vrcp.pop %v1005
        %v1037 = vmul.f32 1.0, %v1036
        %v1038 = vmul.f32 %v880, %v1007
        %v1039 = vmul.f32 %v883, %v1009
        %v1040 = vmul.f32 %v888, %v1011
        %v1041 = vmul.f32 %v891, %v1013
        %v1042 = vmul.f32 %v896, %v1015
        %v1043 = vmul.f32 %v899, %v1017
        %v1044 = vmul.f32 %v904, %v1019
        %v1045 = vmul.f32 %v907, %v1021
        %v1046 = vmul.f32 %v912, %v1023
        %v1047 = vmul.f32 %v915, %v1025
        %v1048 = vmul.f32 %v920, %v1027
        %v1049 = vmul.f32 %v923, %v1029
        %v1050 = vmul.f32 %v928, %v1031
        %v1051 = vmul.f32 %v931, %v1033
        %v1052 = vmul.f32 %v936, %v1035
        %v1053 = vmul.f32 %v939, %v1037
        %v1054 = vld [vmem:[%s399] sm:$0x1]
        %v1055 = vld [vmem:[%s399 + $0x1] sm:$0x1]
        %v1056 = vadd.f32 %v1054, 1.0
        %v1057 = vadd.f32 %v1055, 1.0
        %v1060 = vlaneseq
        %v1061 = vshrl.u32 %v1060, 7
        %v1062 = vsub.s32 0, %v1061
        %v1063 = vrot.slane %v1056, %v1062
        %v1064 = vlaneseq
        %v1065 = vshrl.u32 %v1064, 7
        %v1066 = vsub.s32 0, %v1065
        %v1067 = vrot.slane %v1057, %v1066
        %v1070 = vmul.f32 %v1038, %v1063
        %v1071 = vmul.f32 %v1039, %v1063
        %v1072 = vmul.f32 %v1040, %v1063
        %v1073 = vmul.f32 %v1041, %v1063
        %v1074 = vmul.f32 %v1042, %v1063
        %v1075 = vmul.f32 %v1043, %v1063
        %v1076 = vmul.f32 %v1044, %v1063
        %v1077 = vmul.f32 %v1045, %v1063
        %v1078 = vmul.f32 %v1046, %v1067
        %v1079 = vmul.f32 %v1047, %v1067
        %v1080 = vmul.f32 %v1048, %v1067
        %v1081 = vmul.f32 %v1049, %v1067
        %v1082 = vmul.f32 %v1050, %v1067
        %v1083 = vmul.f32 %v1051, %v1067
        %v1084 = vmul.f32 %v1052, %v1067
        %v1085 = vmul.f32 %v1053, %v1067
        %v1086 = vld [vmem:[%s404] sm:$0x1]
        %v1087 = vld [vmem:[%s404 + $0x1] sm:$0x1]
        %v1090 = vlaneseq
        %v1091 = vshrl.u32 %v1090, 7
        %v1092 = vsub.s32 0, %v1091
        %v1093 = vrot.slane %v1086, %v1092
        %v1094 = vlaneseq
        %v1095 = vshrl.u32 %v1094, 7
        %v1096 = vsub.s32 0, %v1095
        %v1097 = vrot.slane %v1087, %v1096
        %v1100 = vadd.f32 %v1070, %v1093
        %v1101 = vadd.f32 %v1071, %v1093
        %v1102 = vadd.f32 %v1072, %v1093
        %v1103 = vadd.f32 %v1073, %v1093
        %v1104 = vadd.f32 %v1074, %v1093
        %v1105 = vadd.f32 %v1075, %v1093
        %v1106 = vadd.f32 %v1076, %v1093
        %v1107 = vadd.f32 %v1077, %v1093
        %v1108 = vadd.f32 %v1078, %v1097
        %v1109 = vadd.f32 %v1079, %v1097
        %v1110 = vadd.f32 %v1080, %v1097
        %v1111 = vadd.f32 %v1081, %v1097
        %v1112 = vadd.f32 %v1082, %v1097
        %v1113 = vadd.f32 %v1083, %v1097
        %v1114 = vadd.f32 %v1084, %v1097
        %v1115 = vadd.f32 %v1085, %v1097
        %v1116 = vpack.c.bf16 %v1101, %v1100
        %v1117 = vpack.c.bf16 %v1103, %v1102
        %v1118 = vpack.c.bf16 %v1105, %v1104
        %v1119 = vpack.c.bf16 %v1107, %v1106
        %v1120 = vpack.c.bf16 %v1109, %v1108
        %v1121 = vpack.c.bf16 %v1111, %v1110
        %v1122 = vpack.c.bf16 %v1113, %v1112
        %v1123 = vpack.c.bf16 %v1115, %v1114
        %v1124 = vld [vmem:[%s5] sm:$0xff]
        %v1125 = vld [vmem:[%s5 + $0x8] sm:$0xff]
        %v1126 = vld [vmem:[%s5 + $0x10] sm:$0xff]
        %v1127 = vld [vmem:[%s5 + $0x18] sm:$0xff]
        %v1128 = vld [vmem:[%s5 + $0x20] sm:$0xff]
        %v1129 = vld [vmem:[%s5 + $0x28] sm:$0xff]
        %v1130 = vld [vmem:[%s5 + $0x30] sm:$0xff]
        %v1131 = vld [vmem:[%s5 + $0x38] sm:$0xff]
        %v1132 = vld [vmem:[%s5 + $0x40] sm:$0xff]
        %v1133 = vld [vmem:[%s5 + $0x48] sm:$0xff]
        %v1134 = vld [vmem:[%s5 + $0x50] sm:$0xff]
        %v1135 = vld [vmem:[%s5 + $0x58] sm:$0xff]
        %v1136 = vld [vmem:[%s5 + $0x60] sm:$0xff]
        %v1137 = vld [vmem:[%s5 + $0x68] sm:$0xff]
        %v1138 = vld [vmem:[%s5 + $0x70] sm:$0xff]
        %v1139 = vld [vmem:[%s5 + $0x78] sm:$0xff]
        %v1140 = vld [vmem:[%s6] sm:$0xf]
        %v1142 = vlaneseq
        %v1143 = vshrl.u32 %v1142, 7
        %v1144 = vsub.s32 0, %v1143
        %v1145 = vrot.slane %v1140, %v1144
        %v1146 = vlaneseq
        %v1147 = vshrl.u32 %v1146, 7
        %v1148 = vsub.s32 1, %v1147
        %v1149 = vrot.slane %v1140, %v1148
        %v1150 = vlaneseq
        %v1151 = vshrl.u32 %v1150, 7
        %v1152 = vsub.s32 2, %v1151
        %v1153 = vrot.slane %v1140, %v1152
        %v1154 = vlaneseq
        %v1155 = vshrl.u32 %v1154, 7
        %v1156 = vsub.s32 3, %v1155
        %v1157 = vrot.slane %v1140, %v1156
        %v1178 = vunpack.c.l.b16 %v1124
        %v1179 = vunpack.c.h.b16 %v1124
        %v1180 = vunpack.c.l.b16 %v1125
        %v1181 = vunpack.c.h.b16 %v1125
        %v1182 = vunpack.c.l.b16 %v1126
        %v1183 = vunpack.c.h.b16 %v1126
        %v1184 = vunpack.c.l.b16 %v1127
        %v1185 = vunpack.c.h.b16 %v1127
        %v1186 = vunpack.c.l.b16 %v1128
        %v1187 = vunpack.c.h.b16 %v1128
        %v1188 = vunpack.c.l.b16 %v1129
        %v1189 = vunpack.c.h.b16 %v1129
        %v1190 = vunpack.c.l.b16 %v1130
        %v1191 = vunpack.c.h.b16 %v1130
        %v1192 = vunpack.c.l.b16 %v1131
        %v1193 = vunpack.c.h.b16 %v1131
        %v1194 = vunpack.c.l.b16 %v1132
        %v1195 = vunpack.c.h.b16 %v1132
        %v1196 = vunpack.c.l.b16 %v1133
        %v1197 = vunpack.c.h.b16 %v1133
        %v1198 = vunpack.c.l.b16 %v1134
        %v1199 = vunpack.c.h.b16 %v1134
        %v1200 = vunpack.c.l.b16 %v1135
        %v1201 = vunpack.c.h.b16 %v1135
        %v1202 = vunpack.c.l.b16 %v1136
        %v1203 = vunpack.c.h.b16 %v1136
        %v1204 = vunpack.c.l.b16 %v1137
        %v1205 = vunpack.c.h.b16 %v1137
        %v1206 = vunpack.c.l.b16 %v1138
        %v1207 = vunpack.c.h.b16 %v1138
        %v1208 = vunpack.c.l.b16 %v1139
        %v1209 = vunpack.c.h.b16 %v1139
        %v1210 = vpack.c.b16 %v1182, %v1178
        %v1211 = vpack.c.b16 %v1183, %v1179
        %v1212 = vpack.c.b16 %v1184, %v1180
        %v1213 = vpack.c.b16 %v1185, %v1181
        %v1214 = vpack.c.b16 %v1190, %v1186
        %v1215 = vpack.c.b16 %v1191, %v1187
        %v1216 = vpack.c.b16 %v1192, %v1188
        %v1217 = vpack.c.b16 %v1193, %v1189
        %v1218 = vpack.c.b16 %v1198, %v1194
        %v1219 = vpack.c.b16 %v1199, %v1195
        %v1220 = vpack.c.b16 %v1200, %v1196
        %v1221 = vpack.c.b16 %v1201, %v1197
        %v1222 = vpack.c.b16 %v1206, %v1202
        %v1223 = vpack.c.b16 %v1207, %v1203
        %v1224 = vpack.c.b16 %v1208, %v1204
        %v1225 = vpack.c.b16 %v1209, %v1205
        %vm1242 = vcmask 523264
        %v1244 = vsel %vm1242, %v1116, 0
        %v1247 = vsel %vm1242, %v1117, 0
        %v1250 = vsel %vm1242, %v1118, 0
        %v1253 = vsel %vm1242, %v1119, 0
        %v1256 = vsel %vm1242, %v1120, 0
        %v1259 = vsel %vm1242, %v1121, 0
        %v1262 = vsel %vm1242, %v1122, 0
        %v1265 = vsel %vm1242, %v1123, 0
        %1267 = vmatprep.subr.bf16.mxu0 %v1211
        %1268 = vmatpush1.bf16.msra.mxu0 %v1210
        %1269 = vmatprep.subr.bf16.mxu0 %v1215
        %1270 = vmatpush1.bf16.msra.mxu0 %v1214
        %1271 = vmatprep.subr.bf16.mxu0 %v1219
        %1272 = vmatpush1.bf16.msra.mxu0 %v1218
        %1273 = vmatprep.subr.bf16.mxu0 %v1223
        %1274 = vmatpush1.bf16.msra.mxu0 %v1222
        %1275 = vmatprep.subr.bf16.mxu0 0
        %1276 = vmatpush1.bf16.msra.mxu0 0
        %1277 = vmatprep.subr.bf16.mxu0 0
        %1278 = vmatpush1.bf16.msra.mxu0 0
        %1279 = vmatprep.subr.bf16.mxu0 0
        %1280 = vmatpush1.bf16.msra.mxu0 0
        %1281 = vmatprep.subr.bf16.mxu0 0
        %1282 = vmatpush1.bf16.msra.mxu0 0
        %1283 = vmatprep.subr.bf16.mxu0 0
        %1284 = vmatpush1.bf16.msra.mxu0 0
        %1285 = vmatprep.subr.bf16.mxu0 0
        %1286 = vmatpush1.bf16.msra.mxu0 0
        %1287 = vmatprep.subr.bf16.mxu0 0
        %1288 = vmatpush1.bf16.msra.mxu0 0
        %1289 = vmatprep.subr.bf16.mxu0 0
        %1290 = vmatpush1.bf16.msra.mxu0 0
        %1291 = vmatprep.subr.bf16.mxu0 0
        %1292 = vmatpush1.bf16.msra.mxu0 0
        %1293 = vmatprep.subr.bf16.mxu0 0
        %1294 = vmatpush1.bf16.msra.mxu0 0
        %1295 = vmatprep.subr.bf16.mxu0 0
        %1296 = vmatpush1.bf16.msra.mxu0 0
        %1297 = vmatprep.subr.bf16.mxu0 0
        %1298 = vmatpush1.bf16.msra.mxu0 0
        %1299 = vmatprep.mubr.bf16.mxu0 0
        %1300 = vmatmul.mubr.bf16.gmra.mrb[0].mxu0 %v1244
        %v1301 = vpop.f32.mrb[0].mxu0
        %v1302 = vadd.f32 %v1145, %v1301
        %v1303 = vpop.f32.mrb[0].mxu0
        %v1304 = vadd.f32 %v1149, %v1303
        %v1305 = vpop.f32.mrb[0].mxu0
        %v1306 = vadd.f32 %v1145, %v1305
        %v1307 = vpop.f32.mrb[0].mxu0
        %v1308 = vadd.f32 %v1149, %v1307
        %1309 = vmatprep.mubr.bf16.mxu0 0
        %1310 = vmatmul.mubr.bf16.gmra.mrb[0].mxu0 %v1247
        %v1311 = vpop.f32.mrb[0].mxu0
        %v1312 = vadd.f32 %v1145, %v1311
        %v1313 = vpop.f32.mrb[0].mxu0
        %v1314 = vadd.f32 %v1149, %v1313
        %v1315 = vpop.f32.mrb[0].mxu0
        %v1316 = vadd.f32 %v1145, %v1315
        %v1317 = vpop.f32.mrb[0].mxu0
        %v1318 = vadd.f32 %v1149, %v1317
        %1319 = vmatprep.mubr.bf16.mxu0 0
        %1320 = vmatmul.mubr.bf16.gmra.mrb[0].mxu0 %v1250
        %v1321 = vpop.f32.mrb[0].mxu0
        %v1322 = vadd.f32 %v1145, %v1321
        %v1323 = vpop.f32.mrb[0].mxu0
        %v1324 = vadd.f32 %v1149, %v1323
        %v1325 = vpop.f32.mrb[0].mxu0
        %v1326 = vadd.f32 %v1145, %v1325
        %v1327 = vpop.f32.mrb[0].mxu0
        %v1328 = vadd.f32 %v1149, %v1327
        %1329 = vmatprep.mubr.bf16.mxu0 0
        %1330 = vmatmul.mubr.bf16.gmra.mrb[0].mxu0 %v1253
        %v1331 = vpop.f32.mrb[0].mxu0
        %v1332 = vadd.f32 %v1145, %v1331
        %v1333 = vpop.f32.mrb[0].mxu0
        %v1334 = vadd.f32 %v1149, %v1333
        %v1335 = vpop.f32.mrb[0].mxu0
        %v1336 = vadd.f32 %v1145, %v1335
        %v1337 = vpop.f32.mrb[0].mxu0
        %v1338 = vadd.f32 %v1149, %v1337
        %1339 = vmatprep.mubr.bf16.mxu0 0
        %1340 = vmatmul.mubr.bf16.gmra.mrb[0].mxu0 %v1256
        %v1341 = vpop.f32.mrb[0].mxu0
        %v1342 = vadd.f32 %v1145, %v1341
        %v1343 = vpop.f32.mrb[0].mxu0
        %v1344 = vadd.f32 %v1149, %v1343
        %v1345 = vpop.f32.mrb[0].mxu0
        %v1346 = vadd.f32 %v1145, %v1345
        %v1347 = vpop.f32.mrb[0].mxu0
        %v1348 = vadd.f32 %v1149, %v1347
        %1349 = vmatprep.mubr.bf16.mxu0 0
        %1350 = vmatmul.mubr.bf16.gmra.mrb[0].mxu0 %v1259
        %v1351 = vpop.f32.mrb[0].mxu0
        %v1352 = vadd.f32 %v1145, %v1351
        %v1353 = vpop.f32.mrb[0].mxu0
        %v1354 = vadd.f32 %v1149, %v1353
        %v1355 = vpop.f32.mrb[0].mxu0
        %v1356 = vadd.f32 %v1145, %v1355
        %v1357 = vpop.f32.mrb[0].mxu0
        %v1358 = vadd.f32 %v1149, %v1357
        %1359 = vmatprep.mubr.bf16.mxu0 0
        %1360 = vmatmul.mubr.bf16.gmra.mrb[0].mxu0 %v1262
        %v1361 = vpop.f32.mrb[0].mxu0
        %v1362 = vadd.f32 %v1145, %v1361
        %v1363 = vpop.f32.mrb[0].mxu0
        %v1364 = vadd.f32 %v1149, %v1363
        %v1365 = vpop.f32.mrb[0].mxu0
        %v1366 = vadd.f32 %v1145, %v1365
        %v1367 = vpop.f32.mrb[0].mxu0
        %v1368 = vadd.f32 %v1149, %v1367
        %1369 = vmatprep.mubr.bf16.mxu0 0
        %1370 = vmatmul.mubr.bf16.gmra.mrb[0].mxu0 %v1265
        %v1371 = vpop.f32.mrb[0].mxu0
        %v1372 = vadd.f32 %v1145, %v1371
        %v1373 = vpop.f32.mrb[0].mxu0
        %v1374 = vadd.f32 %v1149, %v1373
        %v1375 = vpop.f32.mrb[0].mxu0
        %v1376 = vadd.f32 %v1145, %v1375
        %v1377 = vpop.f32.mrb[0].mxu0
        %v1378 = vadd.f32 %v1149, %v1377
        %1379 = vdwg.mxu0
        %1380 = vmatprep.subr.bf16.mxu0 %v1213
        %1381 = vmatpush1.bf16.msra.mxu0 %v1212
        %1382 = vmatprep.subr.bf16.mxu0 %v1217
        %1383 = vmatpush1.bf16.msra.mxu0 %v1216
        %1384 = vmatprep.subr.bf16.mxu0 %v1221
        %1385 = vmatpush1.bf16.msra.mxu0 %v1220
        %1386 = vmatprep.subr.bf16.mxu0 %v1225
        %1387 = vmatpush1.bf16.msra.mxu0 %v1224
        %1388 = vmatprep.subr.bf16.mxu0 0
        %1389 = vmatpush1.bf16.msra.mxu0 0
        %1390 = vmatprep.subr.bf16.mxu0 0
        %1391 = vmatpush1.bf16.msra.mxu0 0
        %1392 = vmatprep.subr.bf16.mxu0 0
        %1393 = vmatpush1.bf16.msra.mxu0 0
        %1394 = vmatprep.subr.bf16.mxu0 0
        %1395 = vmatpush1.bf16.msra.mxu0 0
        %1396 = vmatprep.subr.bf16.mxu0 0
        %1397 = vmatpush1.bf16.msra.mxu0 0
        %1398 = vmatprep.subr.bf16.mxu0 0
        %1399 = vmatpush1.bf16.msra.mxu0 0
        %1400 = vmatprep.subr.bf16.mxu0 0
        %1401 = vmatpush1.bf16.msra.mxu0 0
        %1402 = vmatprep.subr.bf16.mxu0 0
        %1403 = vmatpush1.bf16.msra.mxu0 0
        %1404 = vmatprep.subr.bf16.mxu0 0
        %1405 = vmatpush1.bf16.msra.mxu0 0
        %1406 = vmatprep.subr.bf16.mxu0 0
        %1407 = vmatpush1.bf16.msra.mxu0 0
        %1408 = vmatprep.subr.bf16.mxu0 0
        %1409 = vmatpush1.bf16.msra.mxu0 0
        %1410 = vmatprep.subr.bf16.mxu0 0
        %1411 = vmatpush1.bf16.msra.mxu0 0
        %1412 = vmatprep.mubr.bf16.mxu0 0
        %1413 = vmatmul.mubr.bf16.gmra.mrb[0].mxu0 %v1244
        %v1414 = vpop.f32.mrb[0].mxu0
        %v1415 = vadd.f32 %v1153, %v1414
        %v1416 = vpop.f32.mrb[0].mxu0
        %v1417 = vadd.f32 %v1157, %v1416
        %v1418 = vpop.f32.mrb[0].mxu0
        %v1419 = vadd.f32 %v1153, %v1418
        %v1420 = vpop.f32.mrb[0].mxu0
        %v1421 = vadd.f32 %v1157, %v1420
        %1422 = vmatprep.mubr.bf16.mxu0 0
        %1423 = vmatmul.mubr.bf16.gmra.mrb[0].mxu0 %v1247
        %v1424 = vpop.f32.mrb[0].mxu0
        %v1425 = vadd.f32 %v1153, %v1424
        %v1426 = vpop.f32.mrb[0].mxu0
        %v1427 = vadd.f32 %v1157, %v1426
        %v1428 = vpop.f32.mrb[0].mxu0
        %v1429 = vadd.f32 %v1153, %v1428
        %v1430 = vpop.f32.mrb[0].mxu0
        %v1431 = vadd.f32 %v1157, %v1430
        %1432 = vmatprep.mubr.bf16.mxu0 0
        %1433 = vmatmul.mubr.bf16.gmra.mrb[0].mxu0 %v1250
        %v1434 = vpop.f32.mrb[0].mxu0
        %v1435 = vadd.f32 %v1153, %v1434
        %v1436 = vpop.f32.mrb[0].mxu0
        %v1437 = vadd.f32 %v1157, %v1436
        %v1438 = vpop.f32.mrb[0].mxu0
        %v1439 = vadd.f32 %v1153, %v1438
        %v1440 = vpop.f32.mrb[0].mxu0
        %v1441 = vadd.f32 %v1157, %v1440
        %1442 = vmatprep.mubr.bf16.mxu0 0
        %1443 = vmatmul.mubr.bf16.gmra.mrb[0].mxu0 %v1253
        %v1444 = vpop.f32.mrb[0].mxu0
        %v1445 = vadd.f32 %v1153, %v1444
        %v1446 = vpop.f32.mrb[0].mxu0
        %v1447 = vadd.f32 %v1157, %v1446
        %v1448 = vpop.f32.mrb[0].mxu0
        %v1449 = vadd.f32 %v1153, %v1448
        %v1450 = vpop.f32.mrb[0].mxu0
        %v1451 = vadd.f32 %v1157, %v1450
        %1452 = vmatprep.mubr.bf16.mxu0 0
        %1453 = vmatmul.mubr.bf16.gmra.mrb[0].mxu0 %v1256
        %v1454 = vpop.f32.mrb[0].mxu0
        %v1455 = vadd.f32 %v1153, %v1454
        %v1456 = vpop.f32.mrb[0].mxu0
        %v1457 = vadd.f32 %v1157, %v1456
        %v1458 = vpop.f32.mrb[0].mxu0
        %v1459 = vadd.f32 %v1153, %v1458
        %v1460 = vpop.f32.mrb[0].mxu0
        %v1461 = vadd.f32 %v1157, %v1460
        %1462 = vmatprep.mubr.bf16.mxu0 0
        %1463 = vmatmul.mubr.bf16.gmra.mrb[0].mxu0 %v1259
        %v1464 = vpop.f32.mrb[0].mxu0
        %v1465 = vadd.f32 %v1153, %v1464
        %v1466 = vpop.f32.mrb[0].mxu0
        %v1467 = vadd.f32 %v1157, %v1466
        %v1468 = vpop.f32.mrb[0].mxu0
        %v1469 = vadd.f32 %v1153, %v1468
        %v1470 = vpop.f32.mrb[0].mxu0
        %v1471 = vadd.f32 %v1157, %v1470
        %1472 = vmatprep.mubr.bf16.mxu0 0
        %1473 = vmatmul.mubr.bf16.gmra.mrb[0].mxu0 %v1262
        %v1474 = vpop.f32.mrb[0].mxu0
        %v1475 = vadd.f32 %v1153, %v1474
        %v1476 = vpop.f32.mrb[0].mxu0
        %v1477 = vadd.f32 %v1157, %v1476
        %v1478 = vpop.f32.mrb[0].mxu0
        %v1479 = vadd.f32 %v1153, %v1478
        %v1480 = vpop.f32.mrb[0].mxu0
        %v1481 = vadd.f32 %v1157, %v1480
        %1482 = vmatprep.mubr.bf16.mxu0 0
        %1483 = vmatmul.mubr.bf16.gmra.mrb[0].mxu0 %v1265
        %v1484 = vpop.f32.mrb[0].mxu0
        %v1485 = vadd.f32 %v1153, %v1484
        %v1486 = vpop.f32.mrb[0].mxu0
        %v1487 = vadd.f32 %v1157, %v1486
        %v1488 = vpop.f32.mrb[0].mxu0
        %v1489 = vadd.f32 %v1153, %v1488
        %v1490 = vpop.f32.mrb[0].mxu0
        %v1491 = vadd.f32 %v1157, %v1490
        %1492 = vdwg.mxu0
        %v1493 = vld [vmem:[%s410] sm:$0xf]
        %v1494 = vld [vmem:[%s410 + $0x4] sm:$0xf]
        %v1495 = vadd.f32 %v1493, 1.0
        %v1496 = vadd.f32 %v1494, 1.0
        %v1499 = vlaneseq
        %v1500 = vshrl.u32 %v1499, 7
        %v1501 = vsub.s32 0, %v1500
        %v1502 = vrot.slane %v1495, %v1501
        %v1503 = vlaneseq
        %v1504 = vshrl.u32 %v1503, 7
        %v1505 = vsub.s32 1, %v1504
        %v1506 = vrot.slane %v1495, %v1505
        %v1507 = vlaneseq
        %v1508 = vshrl.u32 %v1507, 7
        %v1509 = vsub.s32 2, %v1508
        %v1510 = vrot.slane %v1495, %v1509
        %v1511 = vlaneseq
        %v1512 = vshrl.u32 %v1511, 7
        %v1513 = vsub.s32 3, %v1512
        %v1514 = vrot.slane %v1495, %v1513
        %v1515 = vlaneseq
        %v1516 = vshrl.u32 %v1515, 7
        %v1517 = vsub.s32 0, %v1516
        %v1518 = vrot.slane %v1496, %v1517
        %v1519 = vlaneseq
        %v1520 = vshrl.u32 %v1519, 7
        %v1521 = vsub.s32 1, %v1520
        %v1522 = vrot.slane %v1496, %v1521
        %v1523 = vlaneseq
        %v1524 = vshrl.u32 %v1523, 7
        %v1525 = vsub.s32 2, %v1524
        %v1526 = vrot.slane %v1496, %v1525
        %v1527 = vlaneseq
        %v1528 = vshrl.u32 %v1527, 7
        %v1529 = vsub.s32 3, %v1528
        %v1530 = vrot.slane %v1496, %v1529
        %v1539 = vmul.f32 %v1302, %v1502
        %v1540 = vmul.f32 %v1304, %v1506
        %v1541 = vmul.f32 %v1415, %v1510
        %v1542 = vmul.f32 %v1417, %v1514
        %v1543 = vmul.f32 %v1306, %v1502
        %v1544 = vmul.f32 %v1308, %v1506
        %v1545 = vmul.f32 %v1419, %v1510
        %v1546 = vmul.f32 %v1421, %v1514
        %v1547 = vmul.f32 %v1312, %v1502
        %v1548 = vmul.f32 %v1314, %v1506
        %v1549 = vmul.f32 %v1425, %v1510
        %v1550 = vmul.f32 %v1427, %v1514
        %v1551 = vmul.f32 %v1316, %v1502
        %v1552 = vmul.f32 %v1318, %v1506
        %v1553 = vmul.f32 %v1429, %v1510
        %v1554 = vmul.f32 %v1431, %v1514
        %v1555 = vmul.f32 %v1322, %v1502
        %v1556 = vmul.f32 %v1324, %v1506
        %v1557 = vmul.f32 %v1435, %v1510
        %v1558 = vmul.f32 %v1437, %v1514
        %v1559 = vmul.f32 %v1326, %v1502
        %v1560 = vmul.f32 %v1328, %v1506
        %v1561 = vmul.f32 %v1439, %v1510
        %v1562 = vmul.f32 %v1441, %v1514
        %v1563 = vmul.f32 %v1332, %v1502
        %v1564 = vmul.f32 %v1334, %v1506
        %v1565 = vmul.f32 %v1445, %v1510
        %v1566 = vmul.f32 %v1447, %v1514
        %v1567 = vmul.f32 %v1336, %v1502
        %v1568 = vmul.f32 %v1338, %v1506
        %v1569 = vmul.f32 %v1449, %v1510
        %v1570 = vmul.f32 %v1451, %v1514
        %v1571 = vmul.f32 %v1342, %v1518
        %v1572 = vmul.f32 %v1344, %v1522
        %v1573 = vmul.f32 %v1455, %v1526
        %v1574 = vmul.f32 %v1457, %v1530
        %v1575 = vmul.f32 %v1346, %v1518
        %v1576 = vmul.f32 %v1348, %v1522
        %v1577 = vmul.f32 %v1459, %v1526
        %v1578 = vmul.f32 %v1461, %v1530
        %v1579 = vmul.f32 %v1352, %v1518
        %v1580 = vmul.f32 %v1354, %v1522
        %v1581 = vmul.f32 %v1465, %v1526
        %v1582 = vmul.f32 %v1467, %v1530
        %v1583 = vmul.f32 %v1356, %v1518
        %v1584 = vmul.f32 %v1358, %v1522
        %v1585 = vmul.f32 %v1469, %v1526
        %v1586 = vmul.f32 %v1471, %v1530
        %v1587 = vmul.f32 %v1362, %v1518
        %v1588 = vmul.f32 %v1364, %v1522
        %v1589 = vmul.f32 %v1475, %v1526
        %v1590 = vmul.f32 %v1477, %v1530
        %v1591 = vmul.f32 %v1366, %v1518
        %v1592 = vmul.f32 %v1368, %v1522
        %v1593 = vmul.f32 %v1479, %v1526
        %v1594 = vmul.f32 %v1481, %v1530
        %v1595 = vmul.f32 %v1372, %v1518
        %v1596 = vmul.f32 %v1374, %v1522
        %v1597 = vmul.f32 %v1485, %v1526
        %v1598 = vmul.f32 %v1487, %v1530
        %v1599 = vmul.f32 %v1376, %v1518
        %v1600 = vmul.f32 %v1378, %v1522
        %v1601 = vmul.f32 %v1489, %v1526
        %v1602 = vmul.f32 %v1491, %v1530
        %v1603 = vld [vmem:[%s416] sm:$0xf]
        %v1604 = vld [vmem:[%s416 + $0x4] sm:$0xf]
        %v1607 = vlaneseq
        %v1608 = vshrl.u32 %v1607, 7
        %v1609 = vsub.s32 0, %v1608
        %v1610 = vrot.slane %v1603, %v1609
        %v1611 = vlaneseq
        %v1612 = vshrl.u32 %v1611, 7
        %v1613 = vsub.s32 1, %v1612
        %v1614 = vrot.slane %v1603, %v1613
        %v1615 = vlaneseq
        %v1616 = vshrl.u32 %v1615, 7
        %v1617 = vsub.s32 2, %v1616
        %v1618 = vrot.slane %v1603, %v1617
        %v1619 = vlaneseq
        %v1620 = vshrl.u32 %v1619, 7
        %v1621 = vsub.s32 3, %v1620
        %v1622 = vrot.slane %v1603, %v1621
        %v1623 = vlaneseq
        %v1624 = vshrl.u32 %v1623, 7
        %v1625 = vsub.s32 0, %v1624
        %v1626 = vrot.slane %v1604, %v1625
        %v1627 = vlaneseq
        %v1628 = vshrl.u32 %v1627, 7
        %v1629 = vsub.s32 1, %v1628
        %v1630 = vrot.slane %v1604, %v1629
        %v1631 = vlaneseq
        %v1632 = vshrl.u32 %v1631, 7
        %v1633 = vsub.s32 2, %v1632
        %v1634 = vrot.slane %v1604, %v1633
        %v1635 = vlaneseq
        %v1636 = vshrl.u32 %v1635, 7
        %v1637 = vsub.s32 3, %v1636
        %v1638 = vrot.slane %v1604, %v1637
        %v1647 = vadd.f32 %v1539, %v1610
        %v1648 = vadd.f32 %v1540, %v1614
        %v1649 = vadd.f32 %v1541, %v1618
        %v1650 = vadd.f32 %v1542, %v1622
        %v1651 = vadd.f32 %v1543, %v1610
        %v1652 = vadd.f32 %v1544, %v1614
        %v1653 = vadd.f32 %v1545, %v1618
        %v1654 = vadd.f32 %v1546, %v1622
        %v1655 = vadd.f32 %v1547, %v1610
        %v1656 = vadd.f32 %v1548, %v1614
        %v1657 = vadd.f32 %v1549, %v1618
        %v1658 = vadd.f32 %v1550, %v1622
        %v1659 = vadd.f32 %v1551, %v1610
        %v1660 = vadd.f32 %v1552, %v1614
        %v1661 = vadd.f32 %v1553, %v1618
        %v1662 = vadd.f32 %v1554, %v1622
        %v1663 = vadd.f32 %v1555, %v1610
        %v1664 = vadd.f32 %v1556, %v1614
        %v1665 = vadd.f32 %v1557, %v1618
        %v1666 = vadd.f32 %v1558, %v1622
        %v1667 = vadd.f32 %v1559, %v1610
        %v1668 = vadd.f32 %v1560, %v1614
        %v1669 = vadd.f32 %v1561, %v1618
        %v1670 = vadd.f32 %v1562, %v1622
        %v1671 = vadd.f32 %v1563, %v1610
        %v1672 = vadd.f32 %v1564, %v1614
        %v1673 = vadd.f32 %v1565, %v1618
        %v1674 = vadd.f32 %v1566, %v1622
        %v1675 = vadd.f32 %v1567, %v1610
        %v1676 = vadd.f32 %v1568, %v1614
        %v1677 = vadd.f32 %v1569, %v1618
        %v1678 = vadd.f32 %v1570, %v1622
        %v1679 = vadd.f32 %v1571, %v1626
        %v1680 = vadd.f32 %v1572, %v1630
        %v1681 = vadd.f32 %v1573, %v1634
        %v1682 = vadd.f32 %v1574, %v1638
        %v1683 = vadd.f32 %v1575, %v1626
        %v1684 = vadd.f32 %v1576, %v1630
        %v1685 = vadd.f32 %v1577, %v1634
        %v1686 = vadd.f32 %v1578, %v1638
        %v1687 = vadd.f32 %v1579, %v1626
        %v1688 = vadd.f32 %v1580, %v1630
        %v1689 = vadd.f32 %v1581, %v1634
        %v1690 = vadd.f32 %v1582, %v1638
        %v1691 = vadd.f32 %v1583, %v1626
        %v1692 = vadd.f32 %v1584, %v1630
        %v1693 = vadd.f32 %v1585, %v1634
        %v1694 = vadd.f32 %v1586, %v1638
        %v1695 = vadd.f32 %v1587, %v1626
        %v1696 = vadd.f32 %v1588, %v1630
        %v1697 = vadd.f32 %v1589, %v1634
        %v1698 = vadd.f32 %v1590, %v1638
        %v1699 = vadd.f32 %v1591, %v1626
        %v1700 = vadd.f32 %v1592, %v1630
        %v1701 = vadd.f32 %v1593, %v1634
        %v1702 = vadd.f32 %v1594, %v1638
        %v1703 = vadd.f32 %v1595, %v1626
        %v1704 = vadd.f32 %v1596, %v1630
        %v1705 = vadd.f32 %v1597, %v1634
        %v1706 = vadd.f32 %v1598, %v1638
        %v1707 = vadd.f32 %v1599, %v1626
        %v1708 = vadd.f32 %v1600, %v1630
        %v1709 = vadd.f32 %v1601, %v1634
        %v1710 = vadd.f32 %v1602, %v1638
        %v1711 = vpack.c.bf16 %v1651, %v1647
        %v1712 = vpack.c.bf16 %v1652, %v1648
        %v1713 = vpack.c.bf16 %v1653, %v1649
        %v1714 = vpack.c.bf16 %v1654, %v1650
        %v1715 = vpack.c.bf16 %v1659, %v1655
        %v1716 = vpack.c.bf16 %v1660, %v1656
        %v1717 = vpack.c.bf16 %v1661, %v1657
        %v1718 = vpack.c.bf16 %v1662, %v1658
        %v1719 = vpack.c.bf16 %v1667, %v1663
        %v1720 = vpack.c.bf16 %v1668, %v1664
        %v1721 = vpack.c.bf16 %v1669, %v1665
        %v1722 = vpack.c.bf16 %v1670, %v1666
        %v1723 = vpack.c.bf16 %v1675, %v1671
        %v1724 = vpack.c.bf16 %v1676, %v1672
        %v1725 = vpack.c.bf16 %v1677, %v1673
        %v1726 = vpack.c.bf16 %v1678, %v1674
        %v1727 = vpack.c.bf16 %v1683, %v1679
        %v1728 = vpack.c.bf16 %v1684, %v1680
        %v1729 = vpack.c.bf16 %v1685, %v1681
        %v1730 = vpack.c.bf16 %v1686, %v1682
        %v1731 = vpack.c.bf16 %v1691, %v1687
        %v1732 = vpack.c.bf16 %v1692, %v1688
        %v1733 = vpack.c.bf16 %v1693, %v1689
        %v1734 = vpack.c.bf16 %v1694, %v1690
        %v1735 = vpack.c.bf16 %v1699, %v1695
        %v1736 = vpack.c.bf16 %v1700, %v1696
        %v1737 = vpack.c.bf16 %v1701, %v1697
        %v1738 = vpack.c.bf16 %v1702, %v1698
        %v1739 = vpack.c.bf16 %v1707, %v1703
        %v1740 = vpack.c.bf16 %v1708, %v1704
        %v1741 = vpack.c.bf16 %v1709, %v1705
        %v1742 = vpack.c.bf16 %v1710, %v1706
        %v1775 = vunpack.c.l.b16 %v1711
        %v1776 = vunpack.c.l.b16 %v1712
        %v1777 = vunpack.c.l.b16 %v1713
        %v1778 = vunpack.c.l.b16 %v1714
        %v1779 = vunpack.c.h.b16 %v1711
        %v1780 = vunpack.c.h.b16 %v1712
        %v1781 = vunpack.c.h.b16 %v1713
        %v1782 = vunpack.c.h.b16 %v1714
        %v1783 = vunpack.c.l.b16 %v1715
        %v1784 = vunpack.c.l.b16 %v1716
        %v1785 = vunpack.c.l.b16 %v1717
        %v1786 = vunpack.c.l.b16 %v1718
        %v1787 = vunpack.c.h.b16 %v1715
        %v1788 = vunpack.c.h.b16 %v1716
        %v1789 = vunpack.c.h.b16 %v1717
        %v1790 = vunpack.c.h.b16 %v1718
        %v1791 = vunpack.c.l.b16 %v1719
        %v1792 = vunpack.c.l.b16 %v1720
        %v1793 = vunpack.c.l.b16 %v1721
        %v1794 = vunpack.c.l.b16 %v1722
        %v1795 = vunpack.c.h.b16 %v1719
        %v1796 = vunpack.c.h.b16 %v1720
        %v1797 = vunpack.c.h.b16 %v1721
        %v1798 = vunpack.c.h.b16 %v1722
        %v1799 = vunpack.c.l.b16 %v1723
        %v1800 = vunpack.c.l.b16 %v1724
        %v1801 = vunpack.c.l.b16 %v1725
        %v1802 = vunpack.c.l.b16 %v1726
        %v1803 = vunpack.c.h.b16 %v1723
        %v1804 = vunpack.c.h.b16 %v1724
        %v1805 = vunpack.c.h.b16 %v1725
        %v1806 = vunpack.c.h.b16 %v1726
        %v1807 = vunpack.c.l.b16 %v1727
        %v1808 = vunpack.c.l.b16 %v1728
        %v1809 = vunpack.c.l.b16 %v1729
        %v1810 = vunpack.c.l.b16 %v1730
        %v1811 = vunpack.c.h.b16 %v1727
        %v1812 = vunpack.c.h.b16 %v1728
        %v1813 = vunpack.c.h.b16 %v1729
        %v1814 = vunpack.c.h.b16 %v1730
        %v1815 = vunpack.c.l.b16 %v1731
        %v1816 = vunpack.c.l.b16 %v1732
        %v1817 = vunpack.c.l.b16 %v1733
        %v1818 = vunpack.c.l.b16 %v1734
        %v1819 = vunpack.c.h.b16 %v1731
        %v1820 = vunpack.c.h.b16 %v1732
        %v1821 = vunpack.c.h.b16 %v1733
        %v1822 = vunpack.c.h.b16 %v1734
        %v1823 = vunpack.c.l.b16 %v1735
        %v1824 = vunpack.c.l.b16 %v1736
        %v1825 = vunpack.c.l.b16 %v1737
        %v1826 = vunpack.c.l.b16 %v1738
        %v1827 = vunpack.c.h.b16 %v1735
        %v1828 = vunpack.c.h.b16 %v1736
        %v1829 = vunpack.c.h.b16 %v1737
        %v1830 = vunpack.c.h.b16 %v1738
        %v1831 = vunpack.c.l.b16 %v1739
        %v1832 = vunpack.c.l.b16 %v1740
        %v1833 = vunpack.c.l.b16 %v1741
        %v1834 = vunpack.c.l.b16 %v1742
        %v1835 = vunpack.c.h.b16 %v1739
        %v1836 = vunpack.c.h.b16 %v1740
        %v1837 = vunpack.c.h.b16 %v1741
        %v1838 = vunpack.c.h.b16 %v1742
        %v1839 = vpack.c.b16 %v1776, %v1775
        %v1840 = vpack.c.b16 %v1778, %v1777
        %v1841 = vpack.c.b16 %v1780, %v1779
        %v1842 = vpack.c.b16 %v1782, %v1781
        %v1843 = vpack.c.b16 %v1784, %v1783
        %v1844 = vpack.c.b16 %v1786, %v1785
        %v1845 = vpack.c.b16 %v1788, %v1787
        %v1846 = vpack.c.b16 %v1790, %v1789
        %v1847 = vpack.c.b16 %v1792, %v1791
        %v1848 = vpack.c.b16 %v1794, %v1793
        %v1849 = vpack.c.b16 %v1796, %v1795
        %v1850 = vpack.c.b16 %v1798, %v1797
        %v1851 = vpack.c.b16 %v1800, %v1799
        %v1852 = vpack.c.b16 %v1802, %v1801
        %v1853 = vpack.c.b16 %v1804, %v1803
        %v1854 = vpack.c.b16 %v1806, %v1805
        %v1855 = vpack.c.b16 %v1808, %v1807
        %v1856 = vpack.c.b16 %v1810, %v1809
        %v1857 = vpack.c.b16 %v1812, %v1811
        %v1858 = vpack.c.b16 %v1814, %v1813
        %v1859 = vpack.c.b16 %v1816, %v1815
        %v1860 = vpack.c.b16 %v1818, %v1817
        %v1861 = vpack.c.b16 %v1820, %v1819
        %v1862 = vpack.c.b16 %v1822, %v1821
        %v1863 = vpack.c.b16 %v1824, %v1823
        %v1864 = vpack.c.b16 %v1826, %v1825
        %v1865 = vpack.c.b16 %v1828, %v1827
        %v1866 = vpack.c.b16 %v1830, %v1829
        %v1867 = vpack.c.b16 %v1832, %v1831
        %v1868 = vpack.c.b16 %v1834, %v1833
        %v1869 = vpack.c.b16 %v1836, %v1835
        %v1870 = vpack.c.b16 %v1838, %v1837
        %1903 = vst [vmem:[%s388] sm:$0xff] %v1839
        %1904 = vst [vmem:[%s388 + $0x8] sm:$0xff] %v1840
        %1905 = vst [vmem:[%s388 + $0x10] sm:$0xff] %v1841
        %1906 = vst [vmem:[%s388 + $0x18] sm:$0xff] %v1842
        %1907 = vst [vmem:[%s388 + $0x20] sm:$0xff] %v1843
        %1908 = vst [vmem:[%s388 + $0x28] sm:$0xff] %v1844
        %1909 = vst [vmem:[%s388 + $0x30] sm:$0xff] %v1845
        %1910 = vst [vmem:[%s388 + $0x38] sm:$0xff] %v1846
        %1911 = vst [vmem:[%s388 + $0x40] sm:$0xff] %v1847
        %1912 = vst [vmem:[%s388 + $0x48] sm:$0xff] %v1848
        %1913 = vst [vmem:[%s388 + $0x50] sm:$0xff] %v1849
        %1914 = vst [vmem:[%s388 + $0x58] sm:$0xff] %v1850
        %1915 = vst [vmem:[%s388 + $0x60] sm:$0xff] %v1851
        %1916 = vst [vmem:[%s388 + $0x68] sm:$0xff] %v1852
        %1917 = vst [vmem:[%s388 + $0x70] sm:$0xff] %v1853
        %1918 = vst [vmem:[%s388 + $0x78] sm:$0xff] %v1854
        %1919 = vst [vmem:[%s388 + $0x80] sm:$0xff] %v1855
        %1920 = vst [vmem:[%s388 + $0x88] sm:$0xff] %v1856
        %1921 = vst [vmem:[%s388 + $0x90] sm:$0xff] %v1857
        %1922 = vst [vmem:[%s388 + $0x98] sm:$0xff] %v1858
        %1923 = vst [vmem:[%s388 + $0xa0] sm:$0xff] %v1859
        %1924 = vst [vmem:[%s388 + $0xa8] sm:$0xff] %v1860
        %1925 = vst [vmem:[%s388 + $0xb0] sm:$0xff] %v1861
        %1926 = vst [vmem:[%s388 + $0xb8] sm:$0xff] %v1862
        %1927 = vst [vmem:[%s388 + $0xc0] sm:$0xff] %v1863
        %1928 = vst [vmem:[%s388 + $0xc8] sm:$0xff] %v1864
        %1929 = vst [vmem:[%s388 + $0xd0] sm:$0xff] %v1865
        %1930 = vst [vmem:[%s388 + $0xd8] sm:$0xff] %v1866
        %1931 = vst [vmem:[%s388 + $0xe0] sm:$0xff] %v1867
        %1932 = vst [vmem:[%s388 + $0xe8] sm:$0xff] %v1868
        %1933 = vst [vmem:[%s388 + $0xf0] sm:$0xff] %v1869
        %1934 = vst [vmem:[%s388 + $0xf8] sm:$0xff] %v1870
        %s1935 = sand.u32 %s245, 1
        %s1936 = scalar_lea.sflag [#allocation3], %s1935
        %s1937 = sand.u32 %s245, 1
        %s1938 = smul.addr %s1937, 256
        %s1939 = scalar_lea.vmem [#allocation2], %s1938
        // Predicated region
        $region57: #{_lambda_.1} parent=55 // pred_check
          %p1940 = pneg %p255
        $region58: #{_lambda_.1} parent=55 // pred_check_branch
          %1942 = sbr.rel (%p1940) target = $region60
        $region59: #{_lambda_.1} parent=55 // pred_region
          %s1943 = smul.u32 2, %s23
          %s1945 = ssub.s32 4096, 4096
          %1946 = vsyncadd %s1936, %s1945
          %s1947 = smul.addr %s1943, 32
          %s1948 = smul.addr %s1947, 64
          %s1949 = scalar_lea.hbm %s9, %s1948
          %s1950 = sshll.u32 %s1939, 4
          %s1951 = int_to_ptr.vmem [resolvable:$true] %s1950
          %1956 = dma.vmem_to_hbm [thread:$0]  %s1951, 4096, %s1949, %s1936, 256, 256, 16
        $region60: #{_lambda_.1} parent=55 // pred_fallthru
          _
      $region56: #{_lambda_.1} parent=5 // pred_fallthru
        _
      %p1957 = scmp.le.s32.totalorder 2, %s18
      // Predicated region
      $region61: #{_lambda_.1} parent=5 // pred_check
        %p1958 = pneg %p1957
      $region62: #{_lambda_.1} parent=5 // pred_check_branch
        %1960 = sbr.rel (%p1958) target = $region64
      $region63: #{_lambda_.1} parent=5 // pred_region
        %s1961 = ssub.s32 %s18, 2
        // Predicated region
        $region65: #{_lambda_.1} parent=63 // pred_check
          %p1962 = pneg %p261
        $region66: #{_lambda_.1} parent=63 // pred_check_branch
          %1964 = sbr.rel (%p1962) target = $region68
        $region67: #{_lambda_.1} parent=63 // pred_region
          %s1965 = sand.u32 %s246, 1
          %s1966 = scalar_lea.sflag [#allocation3], %s1965
          %s1967 = sand.u32 %s246, 1
          %s1968 = smul.addr %s1967, 256
          %s1969 = scalar_lea.vmem [#allocation2], %s1968
          %1970 = dma.done %s1966, 4096
        $region68: #{_lambda_.1} parent=63 // pred_fallthru
          _
      $region64: #{_lambda_.1} parent=5 // pred_fallthru
        _
    $region6: #{_lambda_.1} parent=1 // loop_footer
      %s22 = sadd.s32 1, %s18
    $region7: #{_lambda_.1} parent=1 // loop_footer_branch
      %17 = sbr.rel target = $region3
    $region8: #{_lambda_.1} parent=1 // loop_exit
      _
    %1971 = vsyncpa [#allocation3], 1
    %s1972 = scalar_lea.sflag [#allocation3], 1
    %1973 = vsyncpa %s1972, 1

</llo_original>
